<compile_context>
chip_gen: v6e
topology: v6e:2x2x1
jax: 0.10.0
libtpu: 0.0.40
codegen_flags: <defaults>
</compile_context>

<pallas_src>
import jax
import jax.numpy as jnp
import numpy as np
from jax.experimental import pallas as pl
from jax.experimental.pallas import tpu as pltpu


def _pick_window_tile(total_windows, target=1024, mult=16):
    """Largest divisor of total_windows that is a multiple of `mult` and
    <= target; falls back to the full axis (always a legal block shape)."""
    best = None
    for d in range(mult, min(total_windows, target) + 1, mult):
        if total_windows % d == 0:
            best = d
    return best if best is not None else total_windows


def simple_cnn_forward(x, params):
    B, Cin, H, W = x.shape
    Cout = params["conv_w"].shape[0]
    bottleneck = params["fc1_w"].shape[0]
    num_classes = params["fc2_w"].shape[0]
    K = Cin * 3 * 3
    Kpad = 32
    OH = (H + 2 - 3) // 2 + 1
    OW = (W + 2 - 3) // 2 + 1
    PH, PW = OH // 2, OW // 2        # MaxPool2d(2) floors odd spatial sizes

    # ---- im2col (plain-JAX glue), in bf16. K ordering (c, kh, kw) matches
    #      PyTorch's weight.reshape(Cout, Cin*9); rows are grouped by 2x2 pool
    #      window so the kernel fuses the max-pool with no conv_out writeback.
    xp = jnp.pad(x, ((0, 0), (0, 0), (1, 1), (1, 1))).astype(jnp.bfloat16)
    slabs = []
    for kh in range(3):
        for kw in range(3):
            slabs.append(xp[:, :, kh:kh + 2 * OH:2, kw:kw + 2 * OW:2])
    patches = jnp.stack(slabs, axis=2)                    # (B, Cin, 9, OH, OW)
    patches = patches.reshape(B, K, OH, OW)[:, :, :2 * PH, :2 * PW]
    patches = patches.reshape(B, K, PH, 2, PW, 2)
    # -> (q = dh*2 + dw, B, PH*PW, K)
    patches = patches.transpose(3, 5, 0, 2, 4, 1).reshape(4, B, PH * PW, K)
    patches = jnp.pad(patches, ((0, 0), (0, 0), (0, 0), (0, Kpad - K)))

    # ---- fold BatchNorm (eval stats) + conv bias into the matmul ----
    eps = 1e-5
    scale = params["bn_gamma"] / jnp.sqrt(params["bn_var"] + eps)      # (Cout,)
    shift = (params["conv_b"] - params["bn_mean"]) * scale + params["bn_beta"]
    w_fold = params["conv_w"].reshape(Cout, K).T * scale[None, :]      # (K, Cout)
    w_fold = jnp.pad(w_fold, ((0, Kpad - K), (0, 0))).astype(jnp.bfloat16)
    shift = shift.reshape(1, Cout).astype(jnp.float32)

    fc1_w = params["fc1_w"].T.astype(jnp.bfloat16)       # (Cout, bottleneck)
    fc1_b = params["fc1_b"].reshape(1, bottleneck).astype(jnp.float32)
    fc2_w = params["fc2_w"].T.astype(jnp.bfloat16)       # (bottleneck, NC)
    fc2_b = params["fc2_b"].reshape(1, num_classes).astype(jnp.float32)

    TMQ = _pick_window_tile(PH * PW)                     # pool windows per tile
    NT = (PH * PW) // TMQ
    NB = 2 if (B % 2 == 0 and B >= 2) else 1             # batch tiles (v7x: 2 TCs)
    BB = B // NB
    inv_area = 1.0 / float(PH * PW)

    def fused_kernel(p_ref, w_ref, shift_ref, fc1w_ref, fc1b_ref,
                     fc2w_ref, fc2b_ref, o_ref, feat_acc):
        t = pl.program_id(1)

        # Conv: ONE im2col matmul with the 4 pool-window elements concatenated
        # on M (amortizes MXU fill/drain of the K=32 underfilled matmul).
        p = p_ref[...].reshape(4 * BB * TMQ, Kpad)
        y = jnp.dot(p, w_ref[...], preferred_element_type=jnp.float32)
        y = y.reshape(4, BB * TMQ, Cout)
        # MaxPool2d(2): max over the 4 window elements; commutes with the
        # monotone (+shift, LeakyReLU) epilogue, so the epilogue runs once.
        m = jnp.maximum(jnp.maximum(y[0], y[1]), jnp.maximum(y[2], y[3]))
        z = m + shift_ref[...]                 # folded conv bias + BN (fp32)
        z = jnp.where(z > 0, z, 0.1 * z)       # LeakyReLU(0.1)

        # AdaptiveAvgPool2d(1): accumulate the spatial mean per batch row.
        part = jnp.sum(z.reshape(BB, TMQ, Cout), axis=1) * inv_area  # (BB, Cout)

        @pl.when(t == 0)
        def _():
            feat_acc[...] = jnp.zeros_like(feat_acc)

        feat_acc[...] = feat_acc[...] + part

        # ClassBlock fused into the final spatial step (fc weights resident).
        @pl.when(t == pl.num_programs(1) - 1)
        def _():
            feat = feat_acc[...]                                     # (BB, Cout)
            h = jnp.dot(feat.astype(jnp.bfloat16), fc1w_ref[...],
                        preferred_element_type=jnp.float32) + fc1b_ref[...]
            h = jnp.where(h > 0, h, 0.1 * h)                         # LeakyReLU
            # TODO(synk): Dropout(p=0.5) omitted (eval-mode identity).
            o_ref[0] = (jnp.dot(h.astype(jnp.bfloat16), fc2w_ref[...],
                                preferred_element_type=jnp.float32)
                        + fc2b_ref[...])

    const2 = lambda b, t: (0, 0)
    out = pl.pallas_call(
        fused_kernel,
        out_shape=jax.ShapeDtypeStruct((NB, BB, num_classes), jnp.float32),
        grid=(NB, NT),
        in_specs=[
            pl.BlockSpec((4, BB, TMQ, Kpad), lambda b, t: (0, b, t, 0)),  # patches
            pl.BlockSpec((Kpad, Cout), const2),                       # folded W
            pl.BlockSpec((1, Cout), const2),                          # shift
            pl.BlockSpec((Cout, bottleneck), const2),                 # fc1 W
            pl.BlockSpec((1, bottleneck), const2),                    # fc1 b
            pl.BlockSpec((bottleneck, num_classes), const2),          # fc2 W
            pl.BlockSpec((1, num_classes), const2),                   # fc2 b
        ],
        out_specs=pl.BlockSpec((1, BB, num_classes), lambda b, t: (b, 0, 0)),
        scratch_shapes=[pltpu.VMEM((BB, Cout), jnp.float32)],
        compiler_params=pltpu.CompilerParams(
            # Spatial axis is sequential (pooled-feature accumulator + fused
            # classifier carry state); batch axis is parallel (v7x megacore).
            dimension_semantics=("parallel", "arbitrary"),
            vmem_limit_bytes=48 * 1024 * 1024,   # <= v7x's 64 MiB physical VMEM
        ),
    )(patches, w_fold, shift, fc1_w, fc1_b, fc2_w, fc2_b)
    return out.reshape(B, num_classes)


def reference_forward(x, params):
    # Pure-JAX reference with identical eval-mode semantics (sanity check).
    y = jax.lax.conv_general_dilated(
        x, params["conv_w"], (2, 2), ((1, 1), (1, 1)),
        dimension_numbers=("NCHW", "OIHW", "NCHW"))
    y = y + params["conv_b"][None, :, None, None]
    eps = 1e-5
    scale = params["bn_gamma"] / jnp.sqrt(params["bn_var"] + eps)
    shift = params["bn_beta"] - params["bn_mean"] * scale
    y = y * scale[None, :, None, None] + shift[None, :, None, None]
    y = jnp.where(y > 0, y, 0.1 * y)
    y = jax.lax.reduce_window(y, -jnp.inf, jax.lax.max,
                              (1, 1, 2, 2), (1, 1, 2, 2), "VALID")
    f = jnp.mean(y, axis=(2, 3))
    h = f @ params["fc1_w"].T + params["fc1_b"]
    h = jnp.where(h > 0, h, 0.1 * h)
    return h @ params["fc2_w"].T + params["fc2_b"]


if __name__ == "__main__":
    B, Cin, H, W = 2, 3, 16, 16
    Cout, bottleneck, num_classes = 256, 512, 10

    key = jax.random.PRNGKey(0)
    ks = jax.random.split(key, 5)
    x = jax.random.normal(ks[0], (B, Cin, H, W), jnp.float32)

    # Deterministic parameter init mirroring the module's init scheme:
    # conv: kaiming fan_in; fc1: kaiming fan_out, bias 0; fc2: normal(1e-3),
    # bias 0; BatchNorm: gamma=1, beta=0, running_mean=0, running_var=1.
    params = dict(
        conv_w=jax.random.normal(ks[1], (Cout, Cin, 3, 3), jnp.float32)
        * np.sqrt(2.0 / (Cin * 3 * 3)).astype(np.float32),
        conv_b=jax.random.normal(ks[2], (Cout,), jnp.float32) * 0.05,
        bn_gamma=jnp.ones((Cout,), jnp.float32),
        bn_beta=jnp.zeros((Cout,), jnp.float32),
        bn_mean=jnp.zeros((Cout,), jnp.float32),
        bn_var=jnp.ones((Cout,), jnp.float32),
        fc1_w=jax.random.normal(ks[3], (bottleneck, Cout), jnp.float32)
        * np.sqrt(2.0 / bottleneck).astype(np.float32),
        fc1_b=jnp.zeros((bottleneck,), jnp.float32),
        fc2_w=jax.random.normal(ks[4], (num_classes, bottleneck), jnp.float32) * 0.001,
        fc2_b=jnp.zeros((num_classes,), jnp.float32),
    )

    out = jax.jit(simple_cnn_forward)(x, params)
    out = jax.block_until_ready(out)

    assert out.shape == (B, num_classes), out.shape
    assert bool(jnp.all(jnp.isfinite(out)))
    ref = reference_forward(x, params)
    assert np.allclose(np.asarray(out), np.asarray(ref), rtol=5e-2, atol=1e-2), (
        np.max(np.abs(np.asarray(out) - np.asarray(ref))))
    print("KERNEL_OK")
</pallas_src>

<mosaic_0001>
module attributes {stable_mosaic.version = 11 : i64} {
  func.func @fused_kernel(%arg0: i32, %arg1: i32, %arg2: memref<4x1x16x32xbf16, #tpu.memory_space<vmem>>, %arg3: memref<32x256xbf16, #tpu.memory_space<vmem>>, %arg4: memref<1x256xf32, #tpu.memory_space<vmem>>, %arg5: memref<256x512xbf16, #tpu.memory_space<vmem>>, %arg6: memref<1x512xf32, #tpu.memory_space<vmem>>, %arg7: memref<512x10xbf16, #tpu.memory_space<vmem>>, %arg8: memref<1x10xf32, #tpu.memory_space<vmem>>, %arg9: memref<1x1x10xf32, #tpu.memory_space<vmem>>, %arg10: memref<1x256xf32, #tpu.memory_space<vmem>>) attributes {dimension_semantics = [#tpu.dimension_semantics<parallel>, #tpu.dimension_semantics<arbitrary>], iteration_bounds = array<i64: 2, 1>, scalar_prefetch = 0 : i64, scratch_operands = 1 : i64, tpu.core_type = #tpu.core_type<tc>, window_params = [{transform_indices = @transform_0, window_bounds = array<i64: 4, 1, 16, 32>}, {pipeline_mode = #tpu.pipeline_mode<synchronous>, transform_indices = @transform_1, window_bounds = array<i64: 32, 256>}, {pipeline_mode = #tpu.pipeline_mode<synchronous>, transform_indices = @transform_2, window_bounds = array<i64: 1, 256>}, {pipeline_mode = #tpu.pipeline_mode<synchronous>, transform_indices = @transform_3, window_bounds = array<i64: 256, 512>}, {pipeline_mode = #tpu.pipeline_mode<synchronous>, transform_indices = @transform_4, window_bounds = array<i64: 1, 512>}, {pipeline_mode = #tpu.pipeline_mode<synchronous>, transform_indices = @transform_5, window_bounds = array<i64: 512, 10>}, {pipeline_mode = #tpu.pipeline_mode<synchronous>, transform_indices = @transform_6, window_bounds = array<i64: 1, 10>}, {transform_indices = @transform_7, window_bounds = array<i64: 1, 1, 10>}]} {
    %c0 = arith.constant 0 : index
    %c0_0 = arith.constant 0 : index
    %c0_1 = arith.constant 0 : index
    %c0_2 = arith.constant 0 : index
    %0 = vector.load %arg2[%c0, %c0_0, %c0_1, %c0_2] : memref<4x1x16x32xbf16, #tpu.memory_space<vmem>>, vector<4x1x16x32xbf16>
    %1 = vector.shape_cast %0 : vector<4x1x16x32xbf16> to vector<64x32xbf16>
    %c0_3 = arith.constant 0 : index
    %c0_4 = arith.constant 0 : index
    %2 = vector.load %arg3[%c0_3, %c0_4] : memref<32x256xbf16, #tpu.memory_space<vmem>>, vector<32x256xbf16>
    %cst = arith.constant dense<0.000000e+00> : vector<64x256xf32>
    %3 = tpu.matmul %1, %2, %cst {dimension_numbers = #tpu.dot_dimension_numbers<[1], [0], [0], [1], [0, 0, 1, 1], [], []>} : vector<64x32xbf16>, vector<32x256xbf16>, vector<64x256xf32> -> vector<64x256xf32>
    %4 = vector.shape_cast %3 : vector<64x256xf32> to vector<4x16x256xf32>
    %5 = vector.extract_strided_slice %4 {offsets = [0, 0, 0], sizes = [1, 16, 256], strides = [1, 1, 1]} : vector<4x16x256xf32> to vector<1x16x256xf32>
    %6 = vector.shape_cast %5 : vector<1x16x256xf32> to vector<16x256xf32>
    %7 = vector.extract_strided_slice %4 {offsets = [1, 0, 0], sizes = [1, 16, 256], strides = [1, 1, 1]} : vector<4x16x256xf32> to vector<1x16x256xf32>
    %8 = vector.shape_cast %7 : vector<1x16x256xf32> to vector<16x256xf32>
    %9 = arith.maximumf %6, %8 : vector<16x256xf32>
    %10 = vector.extract_strided_slice %4 {offsets = [2, 0, 0], sizes = [1, 16, 256], strides = [1, 1, 1]} : vector<4x16x256xf32> to vector<1x16x256xf32>
    %11 = vector.shape_cast %10 : vector<1x16x256xf32> to vector<16x256xf32>
    %12 = vector.extract_strided_slice %4 {offsets = [3, 0, 0], sizes = [1, 16, 256], strides = [1, 1, 1]} : vector<4x16x256xf32> to vector<1x16x256xf32>
    %13 = vector.shape_cast %12 : vector<1x16x256xf32> to vector<16x256xf32>
    %14 = arith.maximumf %11, %13 : vector<16x256xf32>
    %15 = arith.maximumf %9, %14 : vector<16x256xf32>
    %c0_5 = arith.constant 0 : index
    %c0_6 = arith.constant 0 : index
    %16 = vector.load %arg4[%c0_5, %c0_6] : memref<1x256xf32, #tpu.memory_space<vmem>>, vector<1x256xf32>
    %17 = vector.broadcast %16 : vector<1x256xf32> to vector<16x256xf32>
    %18 = arith.addf %15, %17 : vector<16x256xf32>
    %cst_7 = arith.constant 0.000000e+00 : f32
    %19 = vector.broadcast %cst_7 : f32 to vector<16x256xf32>
    %20 = arith.cmpf ogt, %18, %19 : vector<16x256xf32>
    %cst_8 = arith.constant 1.000000e-01 : f32
    %21 = vector.broadcast %cst_8 : f32 to vector<16x256xf32>
    %22 = arith.mulf %21, %18 : vector<16x256xf32>
    %23 = arith.select %20, %18, %22 : vector<16x256xi1>, vector<16x256xf32>
    %24 = vector.shape_cast %23 : vector<16x256xf32> to vector<1x16x256xf32>
    %cst_9 = arith.constant dense<0.000000e+00> : vector<1x256xf32>
    %25 = vector.multi_reduction <add>, %24, %cst_9 [1] : vector<1x16x256xf32> to vector<1x256xf32>
    %cst_10 = arith.constant 6.250000e-02 : f32
    %26 = vector.broadcast %cst_10 : f32 to vector<1x256xf32>
    %27 = arith.mulf %25, %26 : vector<1x256xf32>
    %c0_i32 = arith.constant 0 : i32
    %28 = arith.cmpi eq, %arg1, %c0_i32 : i32
    %29 = arith.extui %28 : i1 to i32
    %c0_i32_11 = arith.constant 0 : i32
    %30 = arith.cmpi ne, %29, %c0_i32_11 : i32
    scf.if %30 {
      %cst_18 = arith.constant 0.000000e+00 : f32
      %37 = vector.broadcast %cst_18 : f32 to vector<1x256xf32>
      %c0_19 = arith.constant 0 : index
      %c0_20 = arith.constant 0 : index
      %38 = vector.load %arg10[%c0_19, %c0_20] : memref<1x256xf32, #tpu.memory_space<vmem>>, vector<1x256xf32>
      tpu.vector_store %arg10[%c0_19, %c0_20], %37 {strides = array<i32>} : memref<1x256xf32, #tpu.memory_space<vmem>>, vector<1x256xf32>,
    } else {
    }
    %c0_12 = arith.constant 0 : index
    %c0_13 = arith.constant 0 : index
    %31 = vector.load %arg10[%c0_12, %c0_13] : memref<1x256xf32, #tpu.memory_space<vmem>>, vector<1x256xf32>
    %32 = arith.addf %31, %27 : vector<1x256xf32>
    %c0_14 = arith.constant 0 : index
    %c0_15 = arith.constant 0 : index
    %33 = vector.load %arg10[%c0_14, %c0_15] : memref<1x256xf32, #tpu.memory_space<vmem>>, vector<1x256xf32>
    tpu.vector_store %arg10[%c0_14, %c0_15], %32 {strides = array<i32>} : memref<1x256xf32, #tpu.memory_space<vmem>>, vector<1x256xf32>,
    %c0_i32_16 = arith.constant 0 : i32
    %34 = arith.cmpi eq, %arg1, %c0_i32_16 : i32
    %35 = arith.extui %34 : i1 to i32
    %c0_i32_17 = arith.constant 0 : i32
    %36 = arith.cmpi ne, %35, %c0_i32_17 : i32
    scf.if %36 {
      %c0_18 = arith.constant 0 : index
      %c0_19 = arith.constant 0 : index
      %37 = vector.load %arg10[%c0_18, %c0_19] : memref<1x256xf32, #tpu.memory_space<vmem>>, vector<1x256xf32>
      %38 = arith.truncf %37 : vector<1x256xf32> to vector<1x256xbf16>
      %c0_20 = arith.constant 0 : index
      %c0_21 = arith.constant 0 : index
      %39 = vector.load %arg5[%c0_20, %c0_21] : memref<256x512xbf16, #tpu.memory_space<vmem>>, vector<256x512xbf16>
      %cst_22 = arith.constant dense<0.000000e+00> : vector<1x512xf32>
      %40 = tpu.matmul %38, %39, %cst_22 {dimension_numbers = #tpu.dot_dimension_numbers<[1], [0], [0], [1], [0, 0, 1, 1], [], []>} : vector<1x256xbf16>, vector<256x512xbf16>, vector<1x512xf32> -> vector<1x512xf32>
      %c0_23 = arith.constant 0 : index
      %c0_24 = arith.constant 0 : index
      %41 = vector.load %arg6[%c0_23, %c0_24] : memref<1x512xf32, #tpu.memory_space<vmem>>, vector<1x512xf32>
      %42 = arith.addf %40, %41 : vector<1x512xf32>
      %cst_25 = arith.constant 0.000000e+00 : f32
      %43 = vector.broadcast %cst_25 : f32 to vector<1x512xf32>
      %44 = arith.cmpf ogt, %42, %43 : vector<1x512xf32>
      %cst_26 = arith.constant 1.000000e-01 : f32
      %45 = vector.broadcast %cst_26 : f32 to vector<1x512xf32>
      %46 = arith.mulf %45, %42 : vector<1x512xf32>
      %47 = arith.select %44, %42, %46 : vector<1x512xi1>, vector<1x512xf32>
      %48 = arith.truncf %47 : vector<1x512xf32> to vector<1x512xbf16>
      %c0_27 = arith.constant 0 : index
      %c0_28 = arith.constant 0 : index
      %49 = vector.load %arg7[%c0_27, %c0_28] : memref<512x10xbf16, #tpu.memory_space<vmem>>, vector<512x10xbf16>
      %cst_29 = arith.constant dense<0.000000e+00> : vector<1x10xf32>
      %50 = tpu.matmul %48, %49, %cst_29 {dimension_numbers = #tpu.dot_dimension_numbers<[1], [0], [0], [1], [0, 0, 1, 1], [], []>} : vector<1x512xbf16>, vector<512x10xbf16>, vector<1x10xf32> -> vector<1x10xf32>
      %c0_30 = arith.constant 0 : index
      %c0_31 = arith.constant 0 : index
      %51 = vector.load %arg8[%c0_30, %c0_31] : memref<1x10xf32, #tpu.memory_space<vmem>>, vector<1x10xf32>
      %52 = arith.addf %50, %51 : vector<1x10xf32>
      %c0_32 = arith.constant 0 : index
      %c0_33 = arith.constant 0 : index
      %c0_34 = arith.constant 0 : index
      %53 = vector.load %arg9[%c0_32, %c0_33, %c0_34] : memref<1x1x10xf32, #tpu.memory_space<vmem>>, vector<1x1x10xf32>
      %54 = vector.shape_cast %53 : vector<1x1x10xf32> to vector<1x10xf32>
      %55 = vector.shape_cast %52 : vector<1x10xf32> to vector<1x1x10xf32>
      tpu.vector_store %arg9[%c0_32, %c0_33, %c0_34], %55 {strides = array<i32>} : memref<1x1x10xf32, #tpu.memory_space<vmem>>, vector<1x1x10xf32>,
    } else {
    }
    return
  }
  func.func @transform_0(%arg0: i32, %arg1: i32) -> (i32, i32, i32, i32) {
    %c0_i32 = arith.constant 0 : i32
    %c0_i32_0 = arith.constant 0 : i32
    %c0_i32_1 = arith.constant 0 : i32
    return %c0_i32, %arg0, %arg1, %c0_i32_0 : i32, i32, i32, i32
  }
  func.func @transform_1(%arg0: i32, %arg1: i32) -> (i32, i32) {
    %c0_i32 = arith.constant 0 : i32
    %c0_i32_0 = arith.constant 0 : i32
    %c0_i32_1 = arith.constant 0 : i32
    return %c0_i32, %c0_i32_0 : i32, i32
  }
  func.func @transform_2(%arg0: i32, %arg1: i32) -> (i32, i32) {
    %c0_i32 = arith.constant 0 : i32
    %c0_i32_0 = arith.constant 0 : i32
    %c0_i32_1 = arith.constant 0 : i32
    return %c0_i32, %c0_i32_0 : i32, i32
  }
  func.func @transform_3(%arg0: i32, %arg1: i32) -> (i32, i32) {
    %c0_i32 = arith.constant 0 : i32
    %c0_i32_0 = arith.constant 0 : i32
    %c0_i32_1 = arith.constant 0 : i32
    return %c0_i32, %c0_i32_0 : i32, i32
  }
  func.func @transform_4(%arg0: i32, %arg1: i32) -> (i32, i32) {
    %c0_i32 = arith.constant 0 : i32
    %c0_i32_0 = arith.constant 0 : i32
    %c0_i32_1 = arith.constant 0 : i32
    return %c0_i32, %c0_i32_0 : i32, i32
  }
  func.func @transform_5(%arg0: i32, %arg1: i32) -> (i32, i32) {
    %c0_i32 = arith.constant 0 : i32
    %c0_i32_0 = arith.constant 0 : i32
    %c0_i32_1 = arith.constant 0 : i32
    return %c0_i32, %c0_i32_0 : i32, i32
  }
  func.func @transform_6(%arg0: i32, %arg1: i32) -> (i32, i32) {
    %c0_i32 = arith.constant 0 : i32
    %c0_i32_0 = arith.constant 0 : i32
    %c0_i32_1 = arith.constant 0 : i32
    return %c0_i32, %c0_i32_0 : i32, i32
  }
  func.func @transform_7(%arg0: i32, %arg1: i32) -> (i32, i32, i32) {
    %c0_i32 = arith.constant 0 : i32
    %c0_i32_0 = arith.constant 0 : i32
    %c0_i32_1 = arith.constant 0 : i32
    return %arg0, %c0_i32, %c0_i32_0 : i32, i32, i32
  }
}

</mosaic_0001>

<llo_original>
// kernel: simple_cnn_forward.1
$region0: #{simple_cnn_forward.1}
  #allocation0 [shape = 'u32[]', space=smem, size = 0x4, offset = 0x4, fixed_abs, tag = 'smem constant byte address 0x4 - core index']
  #allocation1 [shape = 'u32[144,128]{1,0:T(1,128)}', space=vmem, size = 0x12000, scoped, tag = 'internal scratch']
  #allocation2 [shape = 'f32[1,256]{1,0:T(1,128)}', space=vmem, size = 0x400, scoped, tag = 'scratch operand']
  %s0 = inlined_call_operand.vmem [shape: bf16[4,2,16,32], index: 0, kind: input, shape index: {}]
  %s1 = inlined_call_operand.vmem [shape: bf16[32,256], index: 1, kind: input, shape index: {}]
  %s2 = inlined_call_operand.vmem [shape: f32[1,256], index: 2, kind: input, shape index: {}]
  %s3 = inlined_call_operand.vmem [shape: bf16[256,512], index: 3, kind: input, shape index: {}]
  %s4 = inlined_call_operand.vmem [shape: f32[1,512], index: 4, kind: input, shape index: {}]
  %s5 = inlined_call_operand.vmem [shape: bf16[512,10], index: 5, kind: input, shape index: {}]
  %s6 = inlined_call_operand.vmem [shape: f32[1,10], index: 6, kind: input, shape index: {}]
  %s7 = inlined_call_operand.hbm [shape: f32[2,1,10], index: 7, kind: output, shape index: {}]
  %s8 = sld [smem:[#allocation0]]
  $region110: #{simple_cnn_forward.1} parent=0
    _
  %s10 = ssub.s32 1, %s8
  %s11 = scalar_select 0, %s10, %s8
  $region1: #{simple_cnn_forward.1} parent=0
    #allocation3 [shape = 'u8[32768]{0}', space=vmem, size = 0x8000, scoped, tag = 'input window, operand 0']
    #allocation4 [shape = 'u8[1024]{0}', space=vmem, size = 0x400, scoped, tag = 'output window, operand 0']
    #allocation5 [shape = 's32[2]{0}', space=sflag, size = 0x8, scoped, tag = 'scoped memory for simple_cnn_forward.1']
    %12 = vsyncpa [#allocation5], 0
    %s13 = scalar_lea.sflag [#allocation5], 1
    %14 = vsyncpa %s13, 0
    loop: start=0, step=1, limit=4
    $region2: #{simple_cnn_forward.1} parent=1 // loop_pre_header
      _
    $region3: #{simple_cnn_forward.1} parent=1 // loop_header
      %s16 = sphi 0, %s20
      %p17 = scmp.ge.s32.totalorder %s16, 4
      %s23 = sphi 0, %s35
      %s24 = sphi 0, %s31
      %s25 = sphi 0, %s23
      %s26 = sphi 0, %s24
      %s27 = sphi 0, %s25
      %s28 = sphi 0, %s26
      %s40 = sphi 0, %s42
      %s43 = sphi 0, %s40
      %s44 = sphi 0, %s43
      %s60 = sphi 0, %s44
      %s64 = sphi 0, %s64
      %s66 = sphi 0, %s64
      %s67 = sphi 0, %s66
      %s81 = sphi 0, %s67
      %s85 = sphi 0, %s85
      %s87 = sphi 0, %s85
      %s88 = sphi 0, %s87
      %s102 = sphi 0, %s88
      %s106 = sphi 0, %s106
      %s108 = sphi 0, %s106
      %s109 = sphi 0, %s108
      %s123 = sphi 0, %s109
      %s127 = sphi 0, %s127
      %s129 = sphi 0, %s127
      %s130 = sphi 0, %s129
      %s144 = sphi 0, %s130
      %s148 = sphi 0, %s148
      %s150 = sphi 0, %s148
      %s151 = sphi 0, %s150
      %s165 = sphi 0, %s151
      %s169 = sphi 0, %s169
      %s171 = sphi 0, %s169
      %s172 = sphi 0, %s171
      %s186 = sphi 0, %s172
      %s192 = sphi 0, %s194
      %s195 = sphi 0, %s192
      %s196 = sphi 0, %s195
      %s212 = sphi 0, %s196
    $region4: #{simple_cnn_forward.1} parent=1 // loop_header_branch
      %19 = sbr.rel (%p17) target = $region8
    $region5: #{simple_cnn_forward.1} parent=1 // loop_body
      %s21 = ssub.s32 %s16, 1
      %s22 = ssub.s32 %s16, 2
      %s29 = sadd.s32 1, %s24
      %p30 = scmp.ge.s32.totalorder %s29, 1
      %s31 = scalar_select %p30, 0, %s29
      %s32 = sadd.s32 1, %s23
      %s33 = scalar_select %p30, %s32, %s23
      %p34 = scmp.ge.s32.totalorder %s33, 2
      %s35 = scalar_select %p34, 0, %s33
      %s36 = ssub.s32 %s23, %s35
      %s37 = ssub.s32 %s24, %s31
      %s38 = sor.u32 %s36, %s37
      %p39 = scmp.eq.s32.totalorder %s38, 0
      %s41 = sadd.s32 %s40, 1
      %s42 = scalar_select %p39, %s40, %s41
      %p45 = pneg %p39
      %p46 = scmp.eq.s32.totalorder %s16, 1
      %p47 = por %p45, %p46
      %p48 = scmp.ne.s32.totalorder %s40, %s43
      %p49 = scmp.eq.s32.totalorder %s16, 0
      %p50 = por %p48, %p49
      %p51 = scmp.ne.s32.totalorder %s40, %s43
      %p52 = scmp.eq.s32.totalorder %s21, 1
      %p53 = por %p51, %p52
      %p54 = scmp.ne.s32.totalorder %s43, %s44
      %p55 = scmp.eq.s32.totalorder %s21, 0
      %p56 = por %p54, %p55
      %p57 = scmp.ne.s32.totalorder %s43, %s44
      %p58 = scmp.eq.s32.totalorder %s22, 1
      %p59 = por %p57, %p58
      %p61 = scmp.ne.s32.totalorder %s44, %s60
      %p62 = scmp.eq.s32.totalorder %s22, 0
      %p63 = por %p61, %p62
      %s65 = sadd.s32 %s64, 1
      %p68 = scmp.eq.s32.totalorder %s16, 1
      %p69 = scmp.ne.s32.totalorder %s64, %s66
      %p70 = scmp.eq.s32.totalorder %s16, 0
      %p71 = por %p69, %p70
      %p72 = scmp.ne.s32.totalorder %s64, %s66
      %p73 = scmp.eq.s32.totalorder %s21, 1
      %p74 = por %p72, %p73
      %p75 = scmp.ne.s32.totalorder %s66, %s67
      %p76 = scmp.eq.s32.totalorder %s21, 0
      %p77 = por %p75, %p76
      %p78 = scmp.ne.s32.totalorder %s66, %s67
      %p79 = scmp.eq.s32.totalorder %s22, 1
      %p80 = por %p78, %p79
      %p82 = scmp.ne.s32.totalorder %s67, %s81
      %p83 = scmp.eq.s32.totalorder %s22, 0
      %p84 = por %p82, %p83
      %s86 = sadd.s32 %s85, 1
      %p89 = scmp.eq.s32.totalorder %s16, 1
      %p90 = scmp.ne.s32.totalorder %s85, %s87
      %p91 = scmp.eq.s32.totalorder %s16, 0
      %p92 = por %p90, %p91
      %p93 = scmp.ne.s32.totalorder %s85, %s87
      %p94 = scmp.eq.s32.totalorder %s21, 1
      %p95 = por %p93, %p94
      %p96 = scmp.ne.s32.totalorder %s87, %s88
      %p97 = scmp.eq.s32.totalorder %s21, 0
      %p98 = por %p96, %p97
      %p99 = scmp.ne.s32.totalorder %s87, %s88
      %p100 = scmp.eq.s32.totalorder %s22, 1
      %p101 = por %p99, %p100
      %p103 = scmp.ne.s32.totalorder %s88, %s102
      %p104 = scmp.eq.s32.totalorder %s22, 0
      %p105 = por %p103, %p104
      %s107 = sadd.s32 %s106, 1
      %p110 = scmp.eq.s32.totalorder %s16, 1
      %p111 = scmp.ne.s32.totalorder %s106, %s108
      %p112 = scmp.eq.s32.totalorder %s16, 0
      %p113 = por %p111, %p112
      %p114 = scmp.ne.s32.totalorder %s106, %s108
      %p115 = scmp.eq.s32.totalorder %s21, 1
      %p116 = por %p114, %p115
      %p117 = scmp.ne.s32.totalorder %s108, %s109
      %p118 = scmp.eq.s32.totalorder %s21, 0
      %p119 = por %p117, %p118
      %p120 = scmp.ne.s32.totalorder %s108, %s109
      %p121 = scmp.eq.s32.totalorder %s22, 1
      %p122 = por %p120, %p121
      %p124 = scmp.ne.s32.totalorder %s109, %s123
      %p125 = scmp.eq.s32.totalorder %s22, 0
      %p126 = por %p124, %p125
      %s128 = sadd.s32 %s127, 1
      %p131 = scmp.eq.s32.totalorder %s16, 1
      %p132 = scmp.ne.s32.totalorder %s127, %s129
      %p133 = scmp.eq.s32.totalorder %s16, 0
      %p134 = por %p132, %p133
      %p135 = scmp.ne.s32.totalorder %s127, %s129
      %p136 = scmp.eq.s32.totalorder %s21, 1
      %p137 = por %p135, %p136
      %p138 = scmp.ne.s32.totalorder %s129, %s130
      %p139 = scmp.eq.s32.totalorder %s21, 0
      %p140 = por %p138, %p139
      %p141 = scmp.ne.s32.totalorder %s129, %s130
      %p142 = scmp.eq.s32.totalorder %s22, 1
      %p143 = por %p141, %p142
      %p145 = scmp.ne.s32.totalorder %s130, %s144
      %p146 = scmp.eq.s32.totalorder %s22, 0
      %p147 = por %p145, %p146
      %s149 = sadd.s32 %s148, 1
      %p152 = scmp.eq.s32.totalorder %s16, 1
      %p153 = scmp.ne.s32.totalorder %s148, %s150
      %p154 = scmp.eq.s32.totalorder %s16, 0
      %p155 = por %p153, %p154
      %p156 = scmp.ne.s32.totalorder %s148, %s150
      %p157 = scmp.eq.s32.totalorder %s21, 1
      %p158 = por %p156, %p157
      %p159 = scmp.ne.s32.totalorder %s150, %s151
      %p160 = scmp.eq.s32.totalorder %s21, 0
      %p161 = por %p159, %p160
      %p162 = scmp.ne.s32.totalorder %s150, %s151
      %p163 = scmp.eq.s32.totalorder %s22, 1
      %p164 = por %p162, %p163
      %p166 = scmp.ne.s32.totalorder %s151, %s165
      %p167 = scmp.eq.s32.totalorder %s22, 0
      %p168 = por %p166, %p167
      %s170 = sadd.s32 %s169, 1
      %p173 = scmp.eq.s32.totalorder %s16, 1
      %p174 = scmp.ne.s32.totalorder %s169, %s171
      %p175 = scmp.eq.s32.totalorder %s16, 0
      %p176 = por %p174, %p175
      %p177 = scmp.ne.s32.totalorder %s169, %s171
      %p178 = scmp.eq.s32.totalorder %s21, 1
      %p179 = por %p177, %p178
      %p180 = scmp.ne.s32.totalorder %s171, %s172
      %p181 = scmp.eq.s32.totalorder %s21, 0
      %p182 = por %p180, %p181
      %p183 = scmp.ne.s32.totalorder %s171, %s172
      %p184 = scmp.eq.s32.totalorder %s22, 1
      %p185 = por %p183, %p184
      %p187 = scmp.ne.s32.totalorder %s172, %s186
      %p188 = scmp.eq.s32.totalorder %s22, 0
      %p189 = por %p187, %p188
      %s190 = ssub.s32 %s23, %s35
      %p191 = scmp.eq.s32.totalorder %s190, 0
      %s193 = sadd.s32 %s192, 1
      %s194 = scalar_select %p191, %s192, %s193
      %p197 = pneg %p191
      %p198 = scmp.eq.s32.totalorder %s16, 1
      %p199 = por %p197, %p198
      %p200 = scmp.ne.s32.totalorder %s192, %s195
      %p201 = scmp.eq.s32.totalorder %s16, 0
      %p202 = por %p200, %p201
      %p203 = scmp.ne.s32.totalorder %s192, %s195
      %p204 = scmp.eq.s32.totalorder %s21, 1
      %p205 = por %p203, %p204
      %p206 = scmp.ne.s32.totalorder %s195, %s196
      %p207 = scmp.eq.s32.totalorder %s21, 0
      %p208 = por %p206, %p207
      %p209 = scmp.ne.s32.totalorder %s195, %s196
      %p210 = scmp.eq.s32.totalorder %s22, 1
      %p211 = por %p209, %p210
      %p213 = scmp.ne.s32.totalorder %s196, %s212
      %p214 = scmp.eq.s32.totalorder %s22, 0
      %p215 = por %p213, %p214
      %p216 = scmp.le.s32.totalorder 1, %s16
      %p217 = scmp.lt.s32.totalorder %s16, 3
      %p218 = pnand %p216, %p217
      %p219 = pneg %p218
      // Predicated region
      $region9: #{simple_cnn_forward.1} parent=5 // pred_check
        _
      $region10: #{simple_cnn_forward.1} parent=5 // pred_check_branch
        %221 = sbr.rel (%p218) target = $region12
      $region11: #{simple_cnn_forward.1} parent=5 // pred_region
        %s222 = ssub.s32 %s16, 1
        // Predicated region
        $region13: #{simple_cnn_forward.1} parent=11 // pred_check
          %p223 = pneg %p77
        $region14: #{simple_cnn_forward.1} parent=11 // pred_check_branch
          %225 = sbr.rel (%p223) target = $region16
        $region15: #{simple_cnn_forward.1} parent=11 // pred_region
          _
        $region16: #{simple_cnn_forward.1} parent=11 // pred_fallthru
          _
        // Predicated region
        $region17: #{simple_cnn_forward.1} parent=11 // pred_check
          %p226 = pneg %p98
        $region18: #{simple_cnn_forward.1} parent=11 // pred_check_branch
          %228 = sbr.rel (%p226) target = $region20
        $region19: #{simple_cnn_forward.1} parent=11 // pred_region
          _
        $region20: #{simple_cnn_forward.1} parent=11 // pred_fallthru
          _
        // Predicated region
        $region21: #{simple_cnn_forward.1} parent=11 // pred_check
          %p229 = pneg %p119
        $region22: #{simple_cnn_forward.1} parent=11 // pred_check_branch
          %231 = sbr.rel (%p229) target = $region24
        $region23: #{simple_cnn_forward.1} parent=11 // pred_region
          _
        $region24: #{simple_cnn_forward.1} parent=11 // pred_fallthru
          _
        // Predicated region
        $region25: #{simple_cnn_forward.1} parent=11 // pred_check
          %p232 = pneg %p140
        $region26: #{simple_cnn_forward.1} parent=11 // pred_check_branch
          %234 = sbr.rel (%p232) target = $region28
        $region27: #{simple_cnn_forward.1} parent=11 // pred_region
          _
        $region28: #{simple_cnn_forward.1} parent=11 // pred_fallthru
          _
        // Predicated region
        $region29: #{simple_cnn_forward.1} parent=11 // pred_check
          %p235 = pneg %p161
        $region30: #{simple_cnn_forward.1} parent=11 // pred_check_branch
          %237 = sbr.rel (%p235) target = $region32
        $region31: #{simple_cnn_forward.1} parent=11 // pred_region
          _
        $region32: #{simple_cnn_forward.1} parent=11 // pred_fallthru
          _
        // Predicated region
        $region33: #{simple_cnn_forward.1} parent=11 // pred_check
          %p238 = pneg %p182
        $region34: #{simple_cnn_forward.1} parent=11 // pred_check_branch
          %240 = sbr.rel (%p238) target = $region36
        $region35: #{simple_cnn_forward.1} parent=11 // pred_region
          _
        $region36: #{simple_cnn_forward.1} parent=11 // pred_fallthru
          _
      $region12: #{simple_cnn_forward.1} parent=5 // pred_fallthru
        _
      %p241 = scmp.lt.s32.totalorder %s16, 2
      // Predicated region
      $region37: #{simple_cnn_forward.1} parent=5 // pred_check
        %p242 = pneg %p241
      $region38: #{simple_cnn_forward.1} parent=5 // pred_check_branch
        %244 = sbr.rel (%p242) target = $region40
      $region39: #{simple_cnn_forward.1} parent=5 // pred_region
        // Predicated region
        $region41: #{simple_cnn_forward.1} parent=39 // pred_check
          %p245 = pneg %p50
        $region42: #{simple_cnn_forward.1} parent=39 // pred_check_branch
          %247 = sbr.rel (%p245) target = $region44
        $region43: #{simple_cnn_forward.1} parent=39 // pred_region
          %s248 = sand.u32 %s40, 1
          %s249 = sand.u32 %s40, 1
          %s250 = smul.addr %s249, 32
          %s251 = scalar_lea.vmem [#allocation3], %s250
          %s252 = smul.u32 2, %s24
          %s253 = smul.addr %s23, 2
          %s254 = sadd.s32 %s252, %s253
          %s255 = smul.addr %s254, 4
          %s256 = scalar_lea.vmem %s0, %s255
          // Predicated region
          $region45: #{simple_cnn_forward.1} parent=43 // pred_check
            _
          $region46: #{simple_cnn_forward.1} parent=43 // pred_check_branch
            %258 = sbr.rel (0) target = $region48
          $region47: #{simple_cnn_forward.1} parent=43 // pred_region
            // Predicated region
            $region49: #{simple_cnn_forward.1} parent=47 // pred_check
              _
            $region50: #{simple_cnn_forward.1} parent=47 // pred_check_branch
              %260 = sbr.rel target = $region52
            $region51: #{simple_cnn_forward.1} parent=47 // pred_region
              // Predicated region
              $region64: #{simple_cnn_forward.1} parent=51 // pred_check
                _
              $region65: #{simple_cnn_forward.1} parent=51 // pred_check_branch
                %290 = sbr.rel (0) target = $region67
              $region66: #{simple_cnn_forward.1} parent=51 // pred_region
                loop: start=0, step=1, limit=1
                $region68: #{simple_cnn_forward.1} parent=66 // loop_pre_header
                  _
                $region69: #{simple_cnn_forward.1} parent=66 // loop_header
                  %s292 = sphi 0, %s296
                  %p293 = scmp.ge.s32.totalorder %s292, 1
                  %s297 = sphi %s256, %s256
                  %s298 = sphi %s251, %s251
                $region70: #{simple_cnn_forward.1} parent=66 // loop_header_branch
                  %295 = sbr.rel (%p293) target = $region74
                $region71: #{simple_cnn_forward.1} parent=66 // loop_body
                  _
                $region72: #{simple_cnn_forward.1} parent=66 // loop_footer
                  %s296 = sadd.s32 1, %s292
                $region73: #{simple_cnn_forward.1} parent=66 // loop_footer_branch
                  %291 = sbr.rel target = $region69
                $region74: #{simple_cnn_forward.1} parent=66 // loop_exit
                  _
                %s300 = ssub.s32 16, 1
                loop: start=0, step=1, limit=1
                $region75: #{simple_cnn_forward.1} parent=66 // loop_pre_header
                  _
                $region76: #{simple_cnn_forward.1} parent=66 // loop_header
                  %s302 = sphi 0, %s306
                  %p303 = scmp.ge.s32.totalorder %s302, 1
                  %s307 = sphi %s256, %s256
                  %s308 = sphi %s251, %s251
                $region77: #{simple_cnn_forward.1} parent=66 // loop_header_branch
                  %305 = sbr.rel (%p303) target = $region81
                $region78: #{simple_cnn_forward.1} parent=66 // loop_body
                  %v309 = vld [vmem:[%s307] sm:%s300]
                  %310 = vst [vmem:[%s308] sm:%s300] %v309
                  %v311 = vld [vmem:[%s307 + $0x4] sm:%s300]
                  %312 = vst [vmem:[%s308 + $0x4] sm:%s300] %v311
                  %v313 = vld [vmem:[%s307 + $0x10] sm:%s300]
                  %314 = vst [vmem:[%s308 + $0x8] sm:%s300] %v313
                  %v315 = vld [vmem:[%s307 + $0x14] sm:%s300]
                  %316 = vst [vmem:[%s308 + $0xc] sm:%s300] %v315
                  %v317 = vld [vmem:[%s307 + $0x20] sm:%s300]
                  %318 = vst [vmem:[%s308 + $0x10] sm:%s300] %v317
                  %v319 = vld [vmem:[%s307 + $0x24] sm:%s300]
                  %320 = vst [vmem:[%s308 + $0x14] sm:%s300] %v319
                  %v321 = vld [vmem:[%s307 + $0x30] sm:%s300]
                  %322 = vst [vmem:[%s308 + $0x18] sm:%s300] %v321
                  %v323 = vld [vmem:[%s307 + $0x34] sm:%s300]
                  %324 = vst [vmem:[%s308 + $0x1c] sm:%s300] %v323
                $region79: #{simple_cnn_forward.1} parent=66 // loop_footer
                  %s306 = sadd.s32 1, %s302
                $region80: #{simple_cnn_forward.1} parent=66 // loop_footer_branch
                  %301 = sbr.rel target = $region76
                $region81: #{simple_cnn_forward.1} parent=66 // loop_exit
                  _
              $region67: #{simple_cnn_forward.1} parent=51 // pred_fallthru
                _
            $region52: #{simple_cnn_forward.1} parent=47 // pred_fallthru
              _
            // Predicated region
            $region53: #{simple_cnn_forward.1} parent=47 // pred_check
              _
            $region54: #{simple_cnn_forward.1} parent=47 // pred_check_branch
              %262 = sbr.rel (0) target = $region56
            $region55: #{simple_cnn_forward.1} parent=47 // pred_region
              %s264 = ssub.s32 16, 1
              loop: start=0, step=1, limit=1
              $region57: #{simple_cnn_forward.1} parent=55 // loop_pre_header
                _
              $region58: #{simple_cnn_forward.1} parent=55 // loop_header
                %s266 = sphi 0, %s270
                %p267 = scmp.ge.s32.totalorder %s266, 1
                %s271 = sphi %s256, %s256
                %s272 = sphi %s251, %s251
              $region59: #{simple_cnn_forward.1} parent=55 // loop_header_branch
                %269 = sbr.rel (%p267) target = $region63
              $region60: #{simple_cnn_forward.1} parent=55 // loop_body
                %v273 = vld [vmem:[%s271] sm:%s264]
                %274 = vst [vmem:[%s272] sm:%s264] %v273
                %v275 = vld [vmem:[%s271 + $0x4] sm:%s264]
                %276 = vst [vmem:[%s272 + $0x4] sm:%s264] %v275
                %v277 = vld [vmem:[%s271 + $0x10] sm:%s264]
                %278 = vst [vmem:[%s272 + $0x8] sm:%s264] %v277
                %v279 = vld [vmem:[%s271 + $0x14] sm:%s264]
                %280 = vst [vmem:[%s272 + $0xc] sm:%s264] %v279
                %v281 = vld [vmem:[%s271 + $0x20] sm:%s264]
                %282 = vst [vmem:[%s272 + $0x10] sm:%s264] %v281
                %v283 = vld [vmem:[%s271 + $0x24] sm:%s264]
                %284 = vst [vmem:[%s272 + $0x14] sm:%s264] %v283
                %v285 = vld [vmem:[%s271 + $0x30] sm:%s264]
                %286 = vst [vmem:[%s272 + $0x18] sm:%s264] %v285
                %v287 = vld [vmem:[%s271 + $0x34] sm:%s264]
                %288 = vst [vmem:[%s272 + $0x1c] sm:%s264] %v287
              $region61: #{simple_cnn_forward.1} parent=55 // loop_footer
                %s270 = sadd.s32 1, %s266
              $region62: #{simple_cnn_forward.1} parent=55 // loop_footer_branch
                %265 = sbr.rel target = $region58
              $region63: #{simple_cnn_forward.1} parent=55 // loop_exit
                _
            $region56: #{simple_cnn_forward.1} parent=47 // pred_fallthru
              _
          $region48: #{simple_cnn_forward.1} parent=43 // pred_fallthru
            _
          %325 = vnop
        $region44: #{simple_cnn_forward.1} parent=39 // pred_fallthru
          _
      $region40: #{simple_cnn_forward.1} parent=5 // pred_fallthru
        _
      %p326 = scmp.le.s32.totalorder 1, %s16
      %p327 = scmp.lt.s32.totalorder %s16, 3
      %p328 = pnand %p326, %p327
      %p329 = pneg %p328
      // Predicated region
      $region82: #{simple_cnn_forward.1} parent=5 // pred_check
        _
      $region83: #{simple_cnn_forward.1} parent=5 // pred_check_branch
        %331 = sbr.rel (%p328) target = $region85
      $region84: #{simple_cnn_forward.1} parent=5 // pred_region
        %s332 = ssub.s32 %s16, 1
        %s333 = sand.u32 %s43, 1
        %s334 = sand.u32 %s43, 1
        %s335 = smul.addr %s334, 32
        %s336 = scalar_lea.vmem [#allocation3], %s335
        // Predicated region
        $region86: #{simple_cnn_forward.1} parent=84 // pred_check
          %p337 = pneg %p56
        $region87: #{simple_cnn_forward.1} parent=84 // pred_check_branch
          %339 = sbr.rel (%p337) target = $region89
        $region88: #{simple_cnn_forward.1} parent=84 // pred_region
          _
        $region89: #{simple_cnn_forward.1} parent=84 // pred_fallthru
          _
        %s340 = sand.u32 %s43, 1
        %s341 = sand.u32 %s43, 1
        %s342 = smul.addr %s341, 32
        %s343 = scalar_lea.vmem [#allocation3], %s342
        %p344 = pneg %p56
        %p345 = pneg %p53
        %p346 = pneg %p77
        %p347 = pneg %p74
        %p348 = pneg %p98
        %p349 = pneg %p95
        %p350 = pneg %p119
        %p351 = pneg %p116
        %p352 = pneg %p140
        %p353 = pneg %p137
        %p354 = pneg %p161
        %p355 = pneg %p158
        %p356 = pneg %p182
        %p357 = pneg %p179
        %p358 = pneg %p208
        %p359 = pneg %p205
        %s360 = sand.u32 %s195, 1
        %s361 = scalar_lea.sflag [#allocation5], %s360
        %s362 = sand.u32 %s195, 1
        %s363 = scalar_lea.vmem [#allocation4], %s362
        %s364 = smul.u32 2, %s26
        %v366 = vld [vmem:[%s336] sm:$0xf]
        %v367 = vld [vmem:[%s336 + $0x4] sm:$0xf]
        %v368 = vld [vmem:[%s336 + $0x8] sm:$0xf]
        %v369 = vld [vmem:[%s336 + $0xc] sm:$0xf]
        %v370 = vld [vmem:[%s336 + $0x10] sm:$0xf]
        %v371 = vld [vmem:[%s336 + $0x14] sm:$0xf]
        %v372 = vld [vmem:[%s336 + $0x18] sm:$0xf]
        %v373 = vld [vmem:[%s336 + $0x1c] sm:$0xf]
        %v374 = vld [vmem:[%s1] sm:$0xff]
        %v375 = vld [vmem:[%s1 + $0x8] sm:$0xff]
        %v376 = vld [vmem:[%s1 + $0x10] sm:$0xff]
        %v377 = vld [vmem:[%s1 + $0x18] sm:$0xff]
        %v386 = vunpack.c.l.b16 %v366
        %v387 = vunpack.c.l.b16 %v367
        %v388 = vunpack.c.l.b16 %v368
        %v389 = vunpack.c.l.b16 %v369
        %v390 = vunpack.c.l.b16 %v370
        %v391 = vunpack.c.l.b16 %v371
        %v392 = vunpack.c.l.b16 %v372
        %v393 = vunpack.c.l.b16 %v373
        %v394 = vpack.c.b16 %v387, %v386
        %v395 = vpack.c.b16 %v389, %v388
        %v396 = vpack.c.b16 %v391, %v390
        %v397 = vpack.c.b16 %v393, %v392
        %v402 = vunpack.c.l.b16 %v374
        %v403 = vunpack.c.h.b16 %v374
        %v404 = vunpack.c.l.b16 %v375
        %v405 = vunpack.c.h.b16 %v375
        %v406 = vunpack.c.l.b16 %v376
        %v407 = vunpack.c.h.b16 %v376
        %v408 = vunpack.c.l.b16 %v377
        %v409 = vunpack.c.h.b16 %v377
        %v410 = vpack.c.b16 %v404, %v402
        %v411 = vpack.c.b16 %v405, %v403
        %v412 = vpack.c.b16 %v408, %v406
        %v413 = vpack.c.b16 %v409, %v407
        %vm418 = vcmask 261120
        %v420 = vsel %vm418, %v394, 0
        %v423 = vsel %vm418, %v395, 0
        %v426 = vsel %vm418, %v396, 0
        %v429 = vsel %vm418, %v397, 0
        %431 = vmatprep.subr.bf16.mxu0 0
        %432 = vmatpush1.bf16.msra.mxu0 0
        %433 = vmatprep.subr.bf16.mxu0 0
        %434 = vmatpush1.bf16.msra.mxu0 0
        %435 = vmatprep.subr.bf16.mxu0 0
        %436 = vmatpush1.bf16.msra.mxu0 0
        %437 = vmatprep.subr.bf16.mxu0 0
        %438 = vmatpush1.bf16.msra.mxu0 0
        %439 = vmatprep.subr.bf16.mxu0 0
        %440 = vmatpush1.bf16.msra.mxu0 0
        %441 = vmatprep.subr.bf16.mxu0 0
        %442 = vmatpush1.bf16.msra.mxu0 0
        %443 = vmatprep.subr.bf16.mxu0 %v413
        %444 = vmatpush1.bf16.msra.mxu0 %v412
        %445 = vmatprep.subr.bf16.mxu0 %v411
        %446 = vmatpush1.bf16.msra.mxu0 %v410
        %447 = vmatprep.subr.bf16.mxu0 0
        %448 = vmatpush2.bf16.msra.mxu0 0
        %449 = vmatprep.subr.bf16.mxu0 0
        %450 = vmatpush2.bf16.msra.mxu0 0
        %451 = vmatprep.subr.bf16.mxu0 0
        %452 = vmatpush2.bf16.msra.mxu0 0
        %453 = vmatprep.subr.bf16.mxu0 0
        %454 = vmatpush2.bf16.msra.mxu0 0
        %455 = vmatprep.subr.bf16.mxu0 0
        %456 = vmatpush2.bf16.msra.mxu0 0
        %457 = vmatprep.subr.bf16.mxu0 0
        %458 = vmatpush2.bf16.msra.mxu0 0
        %459 = vmatprep.subr.bf16.mxu0 0
        %460 = vmatpush2.bf16.msra.mxu0 0
        %461 = vmatprep.subr.bf16.mxu0 0
        %462 = vmatpush2.bf16.msra.mxu0 0
        %463 = vmatprep.mubr.bf16.mxu0 0
        %464 = vmatmul.mubr.bf16.gmra.mxu0 %v420
        %v465 = vpop.f32.mrf.mxu0
        %v466 = vadd.f32 0.0, %v465
        %v467 = vpop.f32.mrf.mxu0
        %v468 = vadd.f32 0.0, %v467
        %v469 = vpop.f32.mrf.mxu0
        %v470 = vadd.f32 0.0, %v469
        %v471 = vpop.f32.mrf.mxu0
        %v472 = vadd.f32 0.0, %v471
        %473 = vmatprep.mubr.bf16.mxu0 0
        %474 = vmatmul.mubr.bf16.gmra.mxu0 %v423
        %v475 = vpop.f32.mrf.mxu0
        %v476 = vadd.f32 0.0, %v475
        %v477 = vpop.f32.mrf.mxu0
        %v478 = vadd.f32 0.0, %v477
        %v479 = vpop.f32.mrf.mxu0
        %v480 = vadd.f32 0.0, %v479
        %v481 = vpop.f32.mrf.mxu0
        %v482 = vadd.f32 0.0, %v481
        %483 = vmatprep.mubr.bf16.mxu0 0
        %484 = vmatmul.mubr.bf16.gmra.mxu0 %v426
        %v485 = vpop.f32.mrf.mxu0
        %v486 = vadd.f32 0.0, %v485
        %v487 = vpop.f32.mrf.mxu0
        %v488 = vadd.f32 0.0, %v487
        %v489 = vpop.f32.mrf.mxu0
        %v490 = vadd.f32 0.0, %v489
        %v491 = vpop.f32.mrf.mxu0
        %v492 = vadd.f32 0.0, %v491
        %493 = vmatprep.mubr.bf16.mxu0 0
        %494 = vmatmul.mubr.bf16.gmra.mxu0 %v429
        %v495 = vpop.f32.mrf.mxu0
        %v496 = vadd.f32 0.0, %v495
        %v497 = vpop.f32.mrf.mxu0
        %v498 = vadd.f32 0.0, %v497
        %v499 = vpop.f32.mrf.mxu0
        %v500 = vadd.f32 0.0, %v499
        %v501 = vpop.f32.mrf.mxu0
        %v502 = vadd.f32 0.0, %v501
        %503 = vdwg.mxu0
        %v504 = vmax.f32 %v466, %v476
        %v505 = vmax.f32 %v468, %v478
        %v506 = vmax.f32 %v470, %v480
        %v507 = vmax.f32 %v472, %v482
        %v508 = vmax.f32 %v486, %v496
        %v509 = vmax.f32 %v488, %v498
        %v510 = vmax.f32 %v490, %v500
        %v511 = vmax.f32 %v492, %v502
        %v512 = vmax.f32 %v504, %v508
        %v513 = vmax.f32 %v505, %v509
        %v514 = vmax.f32 %v506, %v510
        %v515 = vmax.f32 %v507, %v511
        %v516 = vld [vmem:[%s2] sm:$0x3]
        %v518 = vlaneseq
        %v519 = vshrl.u32 %v518, 7
        %v520 = vsub.s32 0, %v519
        %v521 = vrot.slane %v516, %v520
        %v522 = vlaneseq
        %v523 = vshrl.u32 %v522, 7
        %v524 = vsub.s32 1, %v523
        %v525 = vrot.slane %v516, %v524
        %v528 = vadd.f32 %v512, %v521
        %v529 = vadd.f32 %v513, %v525
        %v530 = vadd.f32 %v514, %v521
        %v531 = vadd.f32 %v515, %v525
        %vm532 = vcmp.gt.f32.partialorder %v528, 0.0
        %vm533 = vcmp.gt.f32.partialorder %v529, 0.0
        %vm534 = vcmp.gt.f32.partialorder %v530, 0.0
        %vm535 = vcmp.gt.f32.partialorder %v531, 0.0
        %v536 = vmul.f32 %v528, 0.1
        %v537 = vmul.f32 %v529, 0.1
        %v538 = vmul.f32 %v530, 0.1
        %v539 = vmul.f32 %v531, 0.1
        %v540 = vsel %vm532, %v528, %v536
        %v541 = vsel %vm533, %v529, %v537
        %v542 = vsel %vm534, %v530, %v538
        %v543 = vsel %vm535, %v531, %v539
        %v544 = vadd.f32 %v540, %v542
        %v545 = vrot.slane %v544, 4
        %v546 = vadd.f32 %v544, %v545
        %v547 = vrot.slane %v546, 2
        %v548 = vadd.f32 %v546, %v547
        %v549 = vrot.slane %v548, 1
        %v550 = vadd.f32 %v548, %v549
        %v551 = vadd.f32 %v541, %v543
        %v552 = vrot.slane %v551, 4
        %v553 = vadd.f32 %v551, %v552
        %v554 = vrot.slane %v553, 2
        %v555 = vadd.f32 %v553, %v554
        %v556 = vrot.slane %v555, 1
        %v557 = vadd.f32 %v555, %v556
        %v558 = vmul.f32 %v550, 0.0625
        %v559 = vmul.f32 %v557, 0.0625
        %p560 = scmp.eq.s32.totalorder %s26, 0
        // Predicated region
        $region90: #{simple_cnn_forward.1} parent=84 // pred_check
          %p561 = pneg %p560
        $region91: #{simple_cnn_forward.1} parent=84 // pred_check_branch
          %563 = sbr.rel (%p561) target = $region93
        $region92: #{simple_cnn_forward.1} parent=84 // pred_region
          %v564 = vlaneseq
          %vm565 = vcmp.ge.s32.totalorder %v564, 0
          %vm566 = vcmp.lt.s32.totalorder %v564, 256
          %vm567 = vmand %vm565, %vm566
          %568 = vst.msk [vmem:[#allocation2] sm:$0x3] %vm567, 0.0
        $region93: #{simple_cnn_forward.1} parent=84 // pred_fallthru
          _
        %v569 = vld [vmem:[#allocation2] sm:$0x3]
        %v572 = vcombine.low %v558, %v559
        %v574 = vunpack.c.l.s4 1966171168
        %v575 = vunpack.c.0.s8 %v574
        %v576 = vlaneseq
        %v577 = vshrl.u32 %v576, 7
        %v578 = vsub.s32 %v575, %v577
        %v579 = vrot.slane %v572, %v578
        %v581 = vunpack.c.l.s4 1966171168
        %v582 = vunpack.c.0.s8 %v581
        %v583 = vlaneseq
        %v584 = vshrl.u32 %v583, 7
        %v585 = vsub.s32 %v582, %v584
        %v586 = vrot.slane %v579, %v585
        %v588 = vadd.f32 %v569, %v586
        %v589 = vlaneseq
        %vm590 = vcmp.ge.s32.totalorder %v589, 0
        %vm591 = vcmp.lt.s32.totalorder %v589, 256
        %vm592 = vmand %vm590, %vm591
        %593 = vst.msk [vmem:[#allocation2] sm:$0x3] %vm592, %v588
        // Predicated region
        $region94: #{simple_cnn_forward.1} parent=84 // pred_check
          %p594 = pneg %p560
        $region95: #{simple_cnn_forward.1} parent=84 // pred_check_branch
          %596 = sbr.rel (%p594) target = $region97
        $region96: #{simple_cnn_forward.1} parent=84 // pred_region
          %v597 = vld [vmem:[#allocation2] sm:$0x3]
          %v599 = vlaneseq
          %v600 = vshrl.u32 %v599, 7
          %v601 = vsub.s32 0, %v600
          %v602 = vrot.slane %v597, %v601
          %v603 = vlaneseq
          %v604 = vshrl.u32 %v603, 7
          %v605 = vsub.s32 1, %v604
          %v606 = vrot.slane %v597, %v605
          %v609 = vpack.c.bf16 %v602, %v602
          %v610 = vpack.c.bf16 %v606, %v606
          %v611 = vld [vmem:[%s3] sm:$0xff]
          %v612 = vld [vmem:[%s3 + $0x8] sm:$0xff]
          %v613 = vld [vmem:[%s3 + $0x10] sm:$0xff]
          %v614 = vld [vmem:[%s3 + $0x18] sm:$0xff]
          %v615 = vld [vmem:[%s3 + $0x20] sm:$0xff]
          %v616 = vld [vmem:[%s3 + $0x28] sm:$0xff]
          %v617 = vld [vmem:[%s3 + $0x30] sm:$0xff]
          %v618 = vld [vmem:[%s3 + $0x38] sm:$0xff]
          %v619 = vld [vmem:[%s3 + $0x40] sm:$0xff]
          %v620 = vld [vmem:[%s3 + $0x48] sm:$0xff]
          %v621 = vld [vmem:[%s3 + $0x50] sm:$0xff]
          %v622 = vld [vmem:[%s3 + $0x58] sm:$0xff]
          %v623 = vld [vmem:[%s3 + $0x60] sm:$0xff]
          %v624 = vld [vmem:[%s3 + $0x68] sm:$0xff]
          %v625 = vld [vmem:[%s3 + $0x70] sm:$0xff]
          %v626 = vld [vmem:[%s3 + $0x78] sm:$0xff]
          %v627 = vld [vmem:[%s3 + $0x80] sm:$0xff]
          %v628 = vld [vmem:[%s3 + $0x88] sm:$0xff]
          %v629 = vld [vmem:[%s3 + $0x90] sm:$0xff]
          %v630 = vld [vmem:[%s3 + $0x98] sm:$0xff]
          %v631 = vld [vmem:[%s3 + $0xa0] sm:$0xff]
          %v632 = vld [vmem:[%s3 + $0xa8] sm:$0xff]
          %v633 = vld [vmem:[%s3 + $0xb0] sm:$0xff]
          %v634 = vld [vmem:[%s3 + $0xb8] sm:$0xff]
          %v635 = vld [vmem:[%s3 + $0xc0] sm:$0xff]
          %v636 = vld [vmem:[%s3 + $0xc8] sm:$0xff]
          %v637 = vld [vmem:[%s3 + $0xd0] sm:$0xff]
          %v638 = vld [vmem:[%s3 + $0xd8] sm:$0xff]
          %v639 = vld [vmem:[%s3 + $0xe0] sm:$0xff]
          %v640 = vld [vmem:[%s3 + $0xe8] sm:$0xff]
          %v641 = vld [vmem:[%s3 + $0xf0] sm:$0xff]
          %v642 = vld [vmem:[%s3 + $0xf8] sm:$0xff]
          %v643 = vld [vmem:[%s3 + $0x100] sm:$0xff]
          %v644 = vld [vmem:[%s3 + $0x108] sm:$0xff]
          %v645 = vld [vmem:[%s3 + $0x110] sm:$0xff]
          %v646 = vld [vmem:[%s3 + $0x118] sm:$0xff]
          %v647 = vld [vmem:[%s3 + $0x120] sm:$0xff]
          %v648 = vld [vmem:[%s3 + $0x128] sm:$0xff]
          %v649 = vld [vmem:[%s3 + $0x130] sm:$0xff]
          %v650 = vld [vmem:[%s3 + $0x138] sm:$0xff]
          %v651 = vld [vmem:[%s3 + $0x140] sm:$0xff]
          %v652 = vld [vmem:[%s3 + $0x148] sm:$0xff]
          %v653 = vld [vmem:[%s3 + $0x150] sm:$0xff]
          %v654 = vld [vmem:[%s3 + $0x158] sm:$0xff]
          %v655 = vld [vmem:[%s3 + $0x160] sm:$0xff]
          %v656 = vld [vmem:[%s3 + $0x168] sm:$0xff]
          %v657 = vld [vmem:[%s3 + $0x170] sm:$0xff]
          %v658 = vld [vmem:[%s3 + $0x178] sm:$0xff]
          %v659 = vld [vmem:[%s3 + $0x180] sm:$0xff]
          %v660 = vld [vmem:[%s3 + $0x188] sm:$0xff]
          %v661 = vld [vmem:[%s3 + $0x190] sm:$0xff]
          %v662 = vld [vmem:[%s3 + $0x198] sm:$0xff]
          %v663 = vld [vmem:[%s3 + $0x1a0] sm:$0xff]
          %v664 = vld [vmem:[%s3 + $0x1a8] sm:$0xff]
          %v665 = vld [vmem:[%s3 + $0x1b0] sm:$0xff]
          %v666 = vld [vmem:[%s3 + $0x1b8] sm:$0xff]
          %v667 = vld [vmem:[%s3 + $0x1c0] sm:$0xff]
          %v668 = vld [vmem:[%s3 + $0x1c8] sm:$0xff]
          %v669 = vld [vmem:[%s3 + $0x1d0] sm:$0xff]
          %v670 = vld [vmem:[%s3 + $0x1d8] sm:$0xff]
          %v671 = vld [vmem:[%s3 + $0x1e0] sm:$0xff]
          %v672 = vld [vmem:[%s3 + $0x1e8] sm:$0xff]
          %v673 = vld [vmem:[%s3 + $0x1f0] sm:$0xff]
          %v674 = vld [vmem:[%s3 + $0x1f8] sm:$0xff]
          %v675 = vld [vmem:[%s4] sm:$0xf]
          %v740 = vunpack.c.l.b16 %v611
          %v741 = vunpack.c.h.b16 %v611
          %v742 = vunpack.c.l.b16 %v612
          %v743 = vunpack.c.h.b16 %v612
          %v744 = vunpack.c.l.b16 %v613
          %v745 = vunpack.c.h.b16 %v613
          %v746 = vunpack.c.l.b16 %v614
          %v747 = vunpack.c.h.b16 %v614
          %v748 = vunpack.c.l.b16 %v615
          %v749 = vunpack.c.h.b16 %v615
          %v750 = vunpack.c.l.b16 %v616
          %v751 = vunpack.c.h.b16 %v616
          %v752 = vunpack.c.l.b16 %v617
          %v753 = vunpack.c.h.b16 %v617
          %v754 = vunpack.c.l.b16 %v618
          %v755 = vunpack.c.h.b16 %v618
          %v756 = vunpack.c.l.b16 %v619
          %v757 = vunpack.c.h.b16 %v619
          %v758 = vunpack.c.l.b16 %v620
          %v759 = vunpack.c.h.b16 %v620
          %v760 = vunpack.c.l.b16 %v621
          %v761 = vunpack.c.h.b16 %v621
          %v762 = vunpack.c.l.b16 %v622
          %v763 = vunpack.c.h.b16 %v622
          %v764 = vunpack.c.l.b16 %v623
          %v765 = vunpack.c.h.b16 %v623
          %v766 = vunpack.c.l.b16 %v624
          %v767 = vunpack.c.h.b16 %v624
          %v768 = vunpack.c.l.b16 %v625
          %v769 = vunpack.c.h.b16 %v625
          %v770 = vunpack.c.l.b16 %v626
          %v771 = vunpack.c.h.b16 %v626
          %v772 = vunpack.c.l.b16 %v627
          %v773 = vunpack.c.h.b16 %v627
          %v774 = vunpack.c.l.b16 %v628
          %v775 = vunpack.c.h.b16 %v628
          %v776 = vunpack.c.l.b16 %v629
          %v777 = vunpack.c.h.b16 %v629
          %v778 = vunpack.c.l.b16 %v630
          %v779 = vunpack.c.h.b16 %v630
          %v780 = vunpack.c.l.b16 %v631
          %v781 = vunpack.c.h.b16 %v631
          %v782 = vunpack.c.l.b16 %v632
          %v783 = vunpack.c.h.b16 %v632
          %v784 = vunpack.c.l.b16 %v633
          %v785 = vunpack.c.h.b16 %v633
          %v786 = vunpack.c.l.b16 %v634
          %v787 = vunpack.c.h.b16 %v634
          %v788 = vunpack.c.l.b16 %v635
          %v789 = vunpack.c.h.b16 %v635
          %v790 = vunpack.c.l.b16 %v636
          %v791 = vunpack.c.h.b16 %v636
          %v792 = vunpack.c.l.b16 %v637
          %v793 = vunpack.c.h.b16 %v637
          %v794 = vunpack.c.l.b16 %v638
          %v795 = vunpack.c.h.b16 %v638
          %v796 = vunpack.c.l.b16 %v639
          %v797 = vunpack.c.h.b16 %v639
          %v798 = vunpack.c.l.b16 %v640
          %v799 = vunpack.c.h.b16 %v640
          %v800 = vunpack.c.l.b16 %v641
          %v801 = vunpack.c.h.b16 %v641
          %v802 = vunpack.c.l.b16 %v642
          %v803 = vunpack.c.h.b16 %v642
          %v804 = vunpack.c.l.b16 %v643
          %v805 = vunpack.c.h.b16 %v643
          %v806 = vunpack.c.l.b16 %v644
          %v807 = vunpack.c.h.b16 %v644
          %v808 = vunpack.c.l.b16 %v645
          %v809 = vunpack.c.h.b16 %v645
          %v810 = vunpack.c.l.b16 %v646
          %v811 = vunpack.c.h.b16 %v646
          %v812 = vunpack.c.l.b16 %v647
          %v813 = vunpack.c.h.b16 %v647
          %v814 = vunpack.c.l.b16 %v648
          %v815 = vunpack.c.h.b16 %v648
          %v816 = vunpack.c.l.b16 %v649
          %v817 = vunpack.c.h.b16 %v649
          %v818 = vunpack.c.l.b16 %v650
          %v819 = vunpack.c.h.b16 %v650
          %v820 = vunpack.c.l.b16 %v651
          %v821 = vunpack.c.h.b16 %v651
          %v822 = vunpack.c.l.b16 %v652
          %v823 = vunpack.c.h.b16 %v652
          %v824 = vunpack.c.l.b16 %v653
          %v825 = vunpack.c.h.b16 %v653
          %v826 = vunpack.c.l.b16 %v654
          %v827 = vunpack.c.h.b16 %v654
          %v828 = vunpack.c.l.b16 %v655
          %v829 = vunpack.c.h.b16 %v655
          %v830 = vunpack.c.l.b16 %v656
          %v831 = vunpack.c.h.b16 %v656
          %v832 = vunpack.c.l.b16 %v657
          %v833 = vunpack.c.h.b16 %v657
          %v834 = vunpack.c.l.b16 %v658
          %v835 = vunpack.c.h.b16 %v658
          %v836 = vunpack.c.l.b16 %v659
          %v837 = vunpack.c.h.b16 %v659
          %v838 = vunpack.c.l.b16 %v660
          %v839 = vunpack.c.h.b16 %v660
          %v840 = vunpack.c.l.b16 %v661
          %v841 = vunpack.c.h.b16 %v661
          %v842 = vunpack.c.l.b16 %v662
          %v843 = vunpack.c.h.b16 %v662
          %v844 = vunpack.c.l.b16 %v663
          %v845 = vunpack.c.h.b16 %v663
          %v846 = vunpack.c.l.b16 %v664
          %v847 = vunpack.c.h.b16 %v664
          %v848 = vunpack.c.l.b16 %v665
          %v849 = vunpack.c.h.b16 %v665
          %v850 = vunpack.c.l.b16 %v666
          %v851 = vunpack.c.h.b16 %v666
          %v852 = vunpack.c.l.b16 %v667
          %v853 = vunpack.c.h.b16 %v667
          %v854 = vunpack.c.l.b16 %v668
          %v855 = vunpack.c.h.b16 %v668
          %v856 = vunpack.c.l.b16 %v669
          %v857 = vunpack.c.h.b16 %v669
          %v858 = vunpack.c.l.b16 %v670
          %v859 = vunpack.c.h.b16 %v670
          %v860 = vunpack.c.l.b16 %v671
          %v861 = vunpack.c.h.b16 %v671
          %v862 = vunpack.c.l.b16 %v672
          %v863 = vunpack.c.h.b16 %v672
          %v864 = vunpack.c.l.b16 %v673
          %v865 = vunpack.c.h.b16 %v673
          %v866 = vunpack.c.l.b16 %v674
          %v867 = vunpack.c.h.b16 %v674
          %v868 = vpack.c.b16 %v744, %v740
          %v869 = vpack.c.b16 %v745, %v741
          %v870 = vpack.c.b16 %v746, %v742
          %v871 = vpack.c.b16 %v747, %v743
          %v872 = vpack.c.b16 %v752, %v748
          %v873 = vpack.c.b16 %v753, %v749
          %v874 = vpack.c.b16 %v754, %v750
          %v875 = vpack.c.b16 %v755, %v751
          %v876 = vpack.c.b16 %v760, %v756
          %v877 = vpack.c.b16 %v761, %v757
          %v878 = vpack.c.b16 %v762, %v758
          %v879 = vpack.c.b16 %v763, %v759
          %v880 = vpack.c.b16 %v768, %v764
          %v881 = vpack.c.b16 %v769, %v765
          %v882 = vpack.c.b16 %v770, %v766
          %v883 = vpack.c.b16 %v771, %v767
          %v884 = vpack.c.b16 %v776, %v772
          %v885 = vpack.c.b16 %v777, %v773
          %v886 = vpack.c.b16 %v778, %v774
          %v887 = vpack.c.b16 %v779, %v775
          %v888 = vpack.c.b16 %v784, %v780
          %v889 = vpack.c.b16 %v785, %v781
          %v890 = vpack.c.b16 %v786, %v782
          %v891 = vpack.c.b16 %v787, %v783
          %v892 = vpack.c.b16 %v792, %v788
          %v893 = vpack.c.b16 %v793, %v789
          %v894 = vpack.c.b16 %v794, %v790
          %v895 = vpack.c.b16 %v795, %v791
          %v896 = vpack.c.b16 %v800, %v796
          %v897 = vpack.c.b16 %v801, %v797
          %v898 = vpack.c.b16 %v802, %v798
          %v899 = vpack.c.b16 %v803, %v799
          %v900 = vpack.c.b16 %v808, %v804
          %v901 = vpack.c.b16 %v809, %v805
          %v902 = vpack.c.b16 %v810, %v806
          %v903 = vpack.c.b16 %v811, %v807
          %v904 = vpack.c.b16 %v816, %v812
          %v905 = vpack.c.b16 %v817, %v813
          %v906 = vpack.c.b16 %v818, %v814
          %v907 = vpack.c.b16 %v819, %v815
          %v908 = vpack.c.b16 %v824, %v820
          %v909 = vpack.c.b16 %v825, %v821
          %v910 = vpack.c.b16 %v826, %v822
          %v911 = vpack.c.b16 %v827, %v823
          %v912 = vpack.c.b16 %v832, %v828
          %v913 = vpack.c.b16 %v833, %v829
          %v914 = vpack.c.b16 %v834, %v830
          %v915 = vpack.c.b16 %v835, %v831
          %v916 = vpack.c.b16 %v840, %v836
          %v917 = vpack.c.b16 %v841, %v837
          %v918 = vpack.c.b16 %v842, %v838
          %v919 = vpack.c.b16 %v843, %v839
          %v920 = vpack.c.b16 %v848, %v844
          %v921 = vpack.c.b16 %v849, %v845
          %v922 = vpack.c.b16 %v850, %v846
          %v923 = vpack.c.b16 %v851, %v847
          %v924 = vpack.c.b16 %v856, %v852
          %v925 = vpack.c.b16 %v857, %v853
          %v926 = vpack.c.b16 %v858, %v854
          %v927 = vpack.c.b16 %v859, %v855
          %v928 = vpack.c.b16 %v864, %v860
          %v929 = vpack.c.b16 %v865, %v861
          %v930 = vpack.c.b16 %v866, %v862
          %v931 = vpack.c.b16 %v867, %v863
          %v997 = vlaneseq
          %v998 = vshrl.u32 %v997, 7
          %v999 = vsub.s32 0, %v998
          %v1000 = vrot.slane %v675, %v999
          %v1001 = vlaneseq
          %v1002 = vshrl.u32 %v1001, 7
          %v1003 = vsub.s32 1, %v1002
          %v1004 = vrot.slane %v675, %v1003
          %v1005 = vlaneseq
          %v1006 = vshrl.u32 %v1005, 7
          %v1007 = vsub.s32 2, %v1006
          %v1008 = vrot.slane %v675, %v1007
          %v1009 = vlaneseq
          %v1010 = vshrl.u32 %v1009, 7
          %v1011 = vsub.s32 3, %v1010
          %v1012 = vrot.slane %v675, %v1011
          %1017 = vmatprep.subr.bf16.mxu0 %v897
          %1018 = vmatpush1.bf16.msra.mxu0 %v896
          %1019 = vmatprep.subr.bf16.mxu0 %v893
          %1020 = vmatpush1.bf16.msra.mxu0 %v892
          %1021 = vmatprep.subr.bf16.mxu0 %v889
          %1022 = vmatpush1.bf16.msra.mxu0 %v888
          %1023 = vmatprep.subr.bf16.mxu0 %v885
          %1024 = vmatpush1.bf16.msra.mxu0 %v884
          %1025 = vmatprep.subr.bf16.mxu0 %v881
          %1026 = vmatpush1.bf16.msra.mxu0 %v880
          %1027 = vmatprep.subr.bf16.mxu0 %v877
          %1028 = vmatpush1.bf16.msra.mxu0 %v876
          %1029 = vmatprep.subr.bf16.mxu0 %v873
          %1030 = vmatpush1.bf16.msra.mxu0 %v872
          %1031 = vmatprep.subr.bf16.mxu0 %v869
          %1032 = vmatpush1.bf16.msra.mxu0 %v868
          %1033 = vmatprep.subr.bf16.mxu0 %v929
          %1034 = vmatpush2.bf16.msra.mxu0 %v928
          %1035 = vmatprep.subr.bf16.mxu0 %v925
          %1036 = vmatpush2.bf16.msra.mxu0 %v924
          %1037 = vmatprep.subr.bf16.mxu0 %v921
          %1038 = vmatpush2.bf16.msra.mxu0 %v920
          %1039 = vmatprep.subr.bf16.mxu0 %v917
          %1040 = vmatpush2.bf16.msra.mxu0 %v916
          %1041 = vmatprep.subr.bf16.mxu0 %v913
          %1042 = vmatpush2.bf16.msra.mxu0 %v912
          %1043 = vmatprep.subr.bf16.mxu0 %v909
          %1044 = vmatpush2.bf16.msra.mxu0 %v908
          %1045 = vmatprep.subr.bf16.mxu0 %v905
          %1046 = vmatpush2.bf16.msra.mxu0 %v904
          %1047 = vmatprep.subr.bf16.mxu0 %v901
          %1048 = vmatpush2.bf16.msra.mxu0 %v900
          %1049 = vmatprep.mubr.bf16.mxu0 %v610
          %1050 = vmatmul.mubr.bf16.gmra.mxu0 %v609
          %v1051 = vpop.f32.mrf.mxu0
          %v1052 = vadd.f32 %v1000, %v1051
          %v1053 = vpop.f32.mrf.mxu0
          %v1054 = vadd.f32 %v1004, %v1053
          %v1055 = vpop.f32.mrf.mxu0
          %v1056 = vpop.f32.mrf.mxu0
          %1057 = vdwg.mxu0
          %1058 = vmatprep.subr.bf16.mxu0 %v899
          %1059 = vmatpush1.bf16.msra.mxu0 %v898
          %1060 = vmatprep.subr.bf16.mxu0 %v895
          %1061 = vmatpush1.bf16.msra.mxu0 %v894
          %1062 = vmatprep.subr.bf16.mxu0 %v891
          %1063 = vmatpush1.bf16.msra.mxu0 %v890
          %1064 = vmatprep.subr.bf16.mxu0 %v887
          %1065 = vmatpush1.bf16.msra.mxu0 %v886
          %1066 = vmatprep.subr.bf16.mxu0 %v883
          %1067 = vmatpush1.bf16.msra.mxu0 %v882
          %1068 = vmatprep.subr.bf16.mxu0 %v879
          %1069 = vmatpush1.bf16.msra.mxu0 %v878
          %1070 = vmatprep.subr.bf16.mxu0 %v875
          %1071 = vmatpush1.bf16.msra.mxu0 %v874
          %1072 = vmatprep.subr.bf16.mxu0 %v871
          %1073 = vmatpush1.bf16.msra.mxu0 %v870
          %1074 = vmatprep.subr.bf16.mxu0 %v931
          %1075 = vmatpush2.bf16.msra.mxu0 %v930
          %1076 = vmatprep.subr.bf16.mxu0 %v927
          %1077 = vmatpush2.bf16.msra.mxu0 %v926
          %1078 = vmatprep.subr.bf16.mxu0 %v923
          %1079 = vmatpush2.bf16.msra.mxu0 %v922
          %1080 = vmatprep.subr.bf16.mxu0 %v919
          %1081 = vmatpush2.bf16.msra.mxu0 %v918
          %1082 = vmatprep.subr.bf16.mxu0 %v915
          %1083 = vmatpush2.bf16.msra.mxu0 %v914
          %1084 = vmatprep.subr.bf16.mxu0 %v911
          %1085 = vmatpush2.bf16.msra.mxu0 %v910
          %1086 = vmatprep.subr.bf16.mxu0 %v907
          %1087 = vmatpush2.bf16.msra.mxu0 %v906
          %1088 = vmatprep.subr.bf16.mxu0 %v903
          %1089 = vmatpush2.bf16.msra.mxu0 %v902
          %1090 = vmatprep.mubr.bf16.mxu0 %v610
          %1091 = vmatmul.mubr.bf16.gmra.mxu0 %v609
          %v1092 = vpop.f32.mrf.mxu0
          %v1093 = vadd.f32 %v1008, %v1092
          %v1094 = vpop.f32.mrf.mxu0
          %v1095 = vadd.f32 %v1012, %v1094
          %v1096 = vpop.f32.mrf.mxu0
          %v1097 = vpop.f32.mrf.mxu0
          %1098 = vdwg.mxu0
          %vm1099 = vcmp.gt.f32.partialorder %v1052, 0.0
          %vm1100 = vcmp.gt.f32.partialorder %v1054, 0.0
          %vm1101 = vcmp.gt.f32.partialorder %v1093, 0.0
          %vm1102 = vcmp.gt.f32.partialorder %v1095, 0.0
          %v1103 = vmul.f32 %v1052, 0.1
          %v1104 = vmul.f32 %v1054, 0.1
          %v1105 = vmul.f32 %v1093, 0.1
          %v1106 = vmul.f32 %v1095, 0.1
          %v1107 = vsel %vm1099, %v1052, %v1103
          %v1108 = vsel %vm1100, %v1054, %v1104
          %v1109 = vsel %vm1101, %v1093, %v1105
          %v1110 = vsel %vm1102, %v1095, %v1106
          %v1111 = vpack.c.bf16 %v1107, %v1107
          %v1112 = vpack.c.bf16 %v1108, %v1108
          %v1113 = vpack.c.bf16 %v1109, %v1109
          %v1114 = vpack.c.bf16 %v1110, %v1110
          %v1115 = vld [vmem:[%s5] sm:$0xf]
          %v1116 = vld [vmem:[%s5 + $0x4] sm:$0xf]
          %v1117 = vld [vmem:[%s5 + $0x8] sm:$0xf]
          %v1118 = vld [vmem:[%s5 + $0xc] sm:$0xf]
          %v1119 = vld [vmem:[%s5 + $0x10] sm:$0xf]
          %v1120 = vld [vmem:[%s5 + $0x14] sm:$0xf]
          %v1121 = vld [vmem:[%s5 + $0x18] sm:$0xf]
          %v1122 = vld [vmem:[%s5 + $0x1c] sm:$0xf]
          %v1123 = vld [vmem:[%s5 + $0x20] sm:$0xf]
          %v1124 = vld [vmem:[%s5 + $0x24] sm:$0xf]
          %v1125 = vld [vmem:[%s5 + $0x28] sm:$0xf]
          %v1126 = vld [vmem:[%s5 + $0x2c] sm:$0xf]
          %v1127 = vld [vmem:[%s5 + $0x30] sm:$0xf]
          %v1128 = vld [vmem:[%s5 + $0x34] sm:$0xf]
          %v1129 = vld [vmem:[%s5 + $0x38] sm:$0xf]
          %v1130 = vld [vmem:[%s5 + $0x3c] sm:$0xf]
          %v1131 = vld [vmem:[%s5 + $0x40] sm:$0xf]
          %v1132 = vld [vmem:[%s5 + $0x44] sm:$0xf]
          %v1133 = vld [vmem:[%s5 + $0x48] sm:$0xf]
          %v1134 = vld [vmem:[%s5 + $0x4c] sm:$0xf]
          %v1135 = vld [vmem:[%s5 + $0x50] sm:$0xf]
          %v1136 = vld [vmem:[%s5 + $0x54] sm:$0xf]
          %v1137 = vld [vmem:[%s5 + $0x58] sm:$0xf]
          %v1138 = vld [vmem:[%s5 + $0x5c] sm:$0xf]
          %v1139 = vld [vmem:[%s5 + $0x60] sm:$0xf]
          %v1140 = vld [vmem:[%s5 + $0x64] sm:$0xf]
          %v1141 = vld [vmem:[%s5 + $0x68] sm:$0xf]
          %v1142 = vld [vmem:[%s5 + $0x6c] sm:$0xf]
          %v1143 = vld [vmem:[%s5 + $0x70] sm:$0xf]
          %v1144 = vld [vmem:[%s5 + $0x74] sm:$0xf]
          %v1145 = vld [vmem:[%s5 + $0x78] sm:$0xf]
          %v1146 = vld [vmem:[%s5 + $0x7c] sm:$0xf]
          %v1147 = vld [vmem:[%s5 + $0x80] sm:$0xf]
          %v1148 = vld [vmem:[%s5 + $0x84] sm:$0xf]
          %v1149 = vld [vmem:[%s5 + $0x88] sm:$0xf]
          %v1150 = vld [vmem:[%s5 + $0x8c] sm:$0xf]
          %v1151 = vld [vmem:[%s5 + $0x90] sm:$0xf]
          %v1152 = vld [vmem:[%s5 + $0x94] sm:$0xf]
          %v1153 = vld [vmem:[%s5 + $0x98] sm:$0xf]
          %v1154 = vld [vmem:[%s5 + $0x9c] sm:$0xf]
          %v1155 = vld [vmem:[%s5 + $0xa0] sm:$0xf]
          %v1156 = vld [vmem:[%s5 + $0xa4] sm:$0xf]
          %v1157 = vld [vmem:[%s5 + $0xa8] sm:$0xf]
          %v1158 = vld [vmem:[%s5 + $0xac] sm:$0xf]
          %v1159 = vld [vmem:[%s5 + $0xb0] sm:$0xf]
          %v1160 = vld [vmem:[%s5 + $0xb4] sm:$0xf]
          %v1161 = vld [vmem:[%s5 + $0xb8] sm:$0xf]
          %v1162 = vld [vmem:[%s5 + $0xbc] sm:$0xf]
          %v1163 = vld [vmem:[%s5 + $0xc0] sm:$0xf]
          %v1164 = vld [vmem:[%s5 + $0xc4] sm:$0xf]
          %v1165 = vld [vmem:[%s5 + $0xc8] sm:$0xf]
          %v1166 = vld [vmem:[%s5 + $0xcc] sm:$0xf]
          %v1167 = vld [vmem:[%s5 + $0xd0] sm:$0xf]
          %v1168 = vld [vmem:[%s5 + $0xd4] sm:$0xf]
          %v1169 = vld [vmem:[%s5 + $0xd8] sm:$0xf]
          %v1170 = vld [vmem:[%s5 + $0xdc] sm:$0xf]
          %v1171 = vld [vmem:[%s5 + $0xe0] sm:$0xf]
          %v1172 = vld [vmem:[%s5 + $0xe4] sm:$0xf]
          %v1173 = vld [vmem:[%s5 + $0xe8] sm:$0xf]
          %v1174 = vld [vmem:[%s5 + $0xec] sm:$0xf]
          %v1175 = vld [vmem:[%s5 + $0xf0] sm:$0xf]
          %v1176 = vld [vmem:[%s5 + $0xf4] sm:$0xf]
          %v1177 = vld [vmem:[%s5 + $0xf8] sm:$0xf]
          %v1178 = vld [vmem:[%s5 + $0xfc] sm:$0xf]
          %v1179 = vld [vmem:[%s6] sm:$0x1]
          %v1244 = vunpack.c.l.b16 %v1115
          %v1245 = vunpack.c.l.b16 %v1116
          %v1246 = vunpack.c.l.b16 %v1117
          %v1247 = vunpack.c.l.b16 %v1118
          %v1248 = vunpack.c.l.b16 %v1119
          %v1249 = vunpack.c.l.b16 %v1120
          %v1250 = vunpack.c.l.b16 %v1121
          %v1251 = vunpack.c.l.b16 %v1122
          %v1252 = vunpack.c.l.b16 %v1123
          %v1253 = vunpack.c.l.b16 %v1124
          %v1254 = vunpack.c.l.b16 %v1125
          %v1255 = vunpack.c.l.b16 %v1126
          %v1256 = vunpack.c.l.b16 %v1127
          %v1257 = vunpack.c.l.b16 %v1128
          %v1258 = vunpack.c.l.b16 %v1129
          %v1259 = vunpack.c.l.b16 %v1130
          %v1260 = vunpack.c.l.b16 %v1131
          %v1261 = vunpack.c.l.b16 %v1132
          %v1262 = vunpack.c.l.b16 %v1133
          %v1263 = vunpack.c.l.b16 %v1134
          %v1264 = vunpack.c.l.b16 %v1135
          %v1265 = vunpack.c.l.b16 %v1136
          %v1266 = vunpack.c.l.b16 %v1137
          %v1267 = vunpack.c.l.b16 %v1138
          %v1268 = vunpack.c.l.b16 %v1139
          %v1269 = vunpack.c.l.b16 %v1140
          %v1270 = vunpack.c.l.b16 %v1141
          %v1271 = vunpack.c.l.b16 %v1142
          %v1272 = vunpack.c.l.b16 %v1143
          %v1273 = vunpack.c.l.b16 %v1144
          %v1274 = vunpack.c.l.b16 %v1145
          %v1275 = vunpack.c.l.b16 %v1146
          %v1276 = vunpack.c.l.b16 %v1147
          %v1277 = vunpack.c.l.b16 %v1148
          %v1278 = vunpack.c.l.b16 %v1149
          %v1279 = vunpack.c.l.b16 %v1150
          %v1280 = vunpack.c.l.b16 %v1151
          %v1281 = vunpack.c.l.b16 %v1152
          %v1282 = vunpack.c.l.b16 %v1153
          %v1283 = vunpack.c.l.b16 %v1154
          %v1284 = vunpack.c.l.b16 %v1155
          %v1285 = vunpack.c.l.b16 %v1156
          %v1286 = vunpack.c.l.b16 %v1157
          %v1287 = vunpack.c.l.b16 %v1158
          %v1288 = vunpack.c.l.b16 %v1159
          %v1289 = vunpack.c.l.b16 %v1160
          %v1290 = vunpack.c.l.b16 %v1161
          %v1291 = vunpack.c.l.b16 %v1162
          %v1292 = vunpack.c.l.b16 %v1163
          %v1293 = vunpack.c.l.b16 %v1164
          %v1294 = vunpack.c.l.b16 %v1165
          %v1295 = vunpack.c.l.b16 %v1166
          %v1296 = vunpack.c.l.b16 %v1167
          %v1297 = vunpack.c.l.b16 %v1168
          %v1298 = vunpack.c.l.b16 %v1169
          %v1299 = vunpack.c.l.b16 %v1170
          %v1300 = vunpack.c.l.b16 %v1171
          %v1301 = vunpack.c.l.b16 %v1172
          %v1302 = vunpack.c.l.b16 %v1173
          %v1303 = vunpack.c.l.b16 %v1174
          %v1304 = vunpack.c.l.b16 %v1175
          %v1305 = vunpack.c.l.b16 %v1176
          %v1306 = vunpack.c.l.b16 %v1177
          %v1307 = vunpack.c.l.b16 %v1178
          %v1308 = vpack.c.b16 %v1245, %v1244
          %v1309 = vpack.c.b16 %v1247, %v1246
          %v1310 = vpack.c.b16 %v1249, %v1248
          %v1311 = vpack.c.b16 %v1251, %v1250
          %v1312 = vpack.c.b16 %v1253, %v1252
          %v1313 = vpack.c.b16 %v1255, %v1254
          %v1314 = vpack.c.b16 %v1257, %v1256
          %v1315 = vpack.c.b16 %v1259, %v1258
          %v1316 = vpack.c.b16 %v1261, %v1260
          %v1317 = vpack.c.b16 %v1263, %v1262
          %v1318 = vpack.c.b16 %v1265, %v1264
          %v1319 = vpack.c.b16 %v1267, %v1266
          %v1320 = vpack.c.b16 %v1269, %v1268
          %v1321 = vpack.c.b16 %v1271, %v1270
          %v1322 = vpack.c.b16 %v1273, %v1272
          %v1323 = vpack.c.b16 %v1275, %v1274
          %v1324 = vpack.c.b16 %v1277, %v1276
          %v1325 = vpack.c.b16 %v1279, %v1278
          %v1326 = vpack.c.b16 %v1281, %v1280
          %v1327 = vpack.c.b16 %v1283, %v1282
          %v1328 = vpack.c.b16 %v1285, %v1284
          %v1329 = vpack.c.b16 %v1287, %v1286
          %v1330 = vpack.c.b16 %v1289, %v1288
          %v1331 = vpack.c.b16 %v1291, %v1290
          %v1332 = vpack.c.b16 %v1293, %v1292
          %v1333 = vpack.c.b16 %v1295, %v1294
          %v1334 = vpack.c.b16 %v1297, %v1296
          %v1335 = vpack.c.b16 %v1299, %v1298
          %v1336 = vpack.c.b16 %v1301, %v1300
          %v1337 = vpack.c.b16 %v1303, %v1302
          %v1338 = vpack.c.b16 %v1305, %v1304
          %v1339 = vpack.c.b16 %v1307, %v1306
          %1372 = vmatprep.subr.bf16.mxu0 0
          %1373 = vmatpush1.bf16.msra.mxu0 %v1315
          %1374 = vmatprep.subr.bf16.mxu0 0
          %1375 = vmatpush1.bf16.msra.mxu0 %v1314
          %1376 = vmatprep.subr.bf16.mxu0 0
          %1377 = vmatpush1.bf16.msra.mxu0 %v1313
          %1378 = vmatprep.subr.bf16.mxu0 0
          %1379 = vmatpush1.bf16.msra.mxu0 %v1312
          %1380 = vmatprep.subr.bf16.mxu0 0
          %1381 = vmatpush1.bf16.msra.mxu0 %v1311
          %1382 = vmatprep.subr.bf16.mxu0 0
          %1383 = vmatpush1.bf16.msra.mxu0 %v1310
          %1384 = vmatprep.subr.bf16.mxu0 0
          %1385 = vmatpush1.bf16.msra.mxu0 %v1309
          %1386 = vmatprep.subr.bf16.mxu0 0
          %1387 = vmatpush1.bf16.msra.mxu0 %v1308
          %1388 = vmatprep.subr.bf16.mxu0 0
          %1389 = vmatpush2.bf16.msra.mxu0 %v1323
          %1390 = vmatprep.subr.bf16.mxu0 0
          %1391 = vmatpush2.bf16.msra.mxu0 %v1322
          %1392 = vmatprep.subr.bf16.mxu0 0
          %1393 = vmatpush2.bf16.msra.mxu0 %v1321
          %1394 = vmatprep.subr.bf16.mxu0 0
          %1395 = vmatpush2.bf16.msra.mxu0 %v1320
          %1396 = vmatprep.subr.bf16.mxu0 0
          %1397 = vmatpush2.bf16.msra.mxu0 %v1319
          %1398 = vmatprep.subr.bf16.mxu0 0
          %1399 = vmatpush2.bf16.msra.mxu0 %v1318
          %1400 = vmatprep.subr.bf16.mxu0 0
          %1401 = vmatpush2.bf16.msra.mxu0 %v1317
          %1402 = vmatprep.subr.bf16.mxu0 0
          %1403 = vmatpush2.bf16.msra.mxu0 %v1316
          %1404 = vmatprep.mubr.bf16.mxu0 %v1112
          %1405 = vmatmul.mubr.bf16.gmra.mxu0 %v1111
          %v1406 = vpop.f32.mrf.mxu0
          %v1407 = vadd.f32 %v1179, %v1406
          %v1408 = vpop.f32.mrf.mxu0
          %v1409 = vpop.f32.mrf.mxu0
          %v1410 = vpop.f32.mrf.mxu0
          %1411 = vdwg.mxu0
          %1412 = vmatprep.subr.bf16.mxu0 0
          %1413 = vmatpush1.bf16.msra.mxu0 %v1331
          %1414 = vmatprep.subr.bf16.mxu0 0
          %1415 = vmatpush1.bf16.msra.mxu0 %v1330
          %1416 = vmatprep.subr.bf16.mxu0 0
          %1417 = vmatpush1.bf16.msra.mxu0 %v1329
          %1418 = vmatprep.subr.bf16.mxu0 0
          %1419 = vmatpush1.bf16.msra.mxu0 %v1328
          %1420 = vmatprep.subr.bf16.mxu0 0
          %1421 = vmatpush1.bf16.msra.mxu0 %v1327
          %1422 = vmatprep.subr.bf16.mxu0 0
          %1423 = vmatpush1.bf16.msra.mxu0 %v1326
          %1424 = vmatprep.subr.bf16.mxu0 0
          %1425 = vmatpush1.bf16.msra.mxu0 %v1325
          %1426 = vmatprep.subr.bf16.mxu0 0
          %1427 = vmatpush1.bf16.msra.mxu0 %v1324
          %1428 = vmatprep.subr.bf16.mxu0 0
          %1429 = vmatpush2.bf16.msra.mxu0 %v1339
          %1430 = vmatprep.subr.bf16.mxu0 0
          %1431 = vmatpush2.bf16.msra.mxu0 %v1338
          %1432 = vmatprep.subr.bf16.mxu0 0
          %1433 = vmatpush2.bf16.msra.mxu0 %v1337
          %1434 = vmatprep.subr.bf16.mxu0 0
          %1435 = vmatpush2.bf16.msra.mxu0 %v1336
          %1436 = vmatprep.subr.bf16.mxu0 0
          %1437 = vmatpush2.bf16.msra.mxu0 %v1335
          %1438 = vmatprep.subr.bf16.mxu0 0
          %1439 = vmatpush2.bf16.msra.mxu0 %v1334
          %1440 = vmatprep.subr.bf16.mxu0 0
          %1441 = vmatpush2.bf16.msra.mxu0 %v1333
          %1442 = vmatprep.subr.bf16.mxu0 0
          %1443 = vmatpush2.bf16.msra.mxu0 %v1332
          %1444 = vmatprep.mubr.bf16.mxu0 %v1114
          %1445 = vmatmul.mubr.bf16.gmra.mxu0 %v1113
          %v1446 = vpop.f32.mrf.mxu0
          %v1447 = vadd.f32 %v1407, %v1446
          %v1448 = vpop.f32.mrf.mxu0
          %v1449 = vpop.f32.mrf.mxu0
          %v1450 = vpop.f32.mrf.mxu0
          %1451 = vdwg.mxu0
          %vm1452 = vcmask 73728
          %1453 = vst.msk [vmem:[%s363] sm:$0x1] %vm1452, %v1447
        $region97: #{simple_cnn_forward.1} parent=84 // pred_fallthru
          _
        %s1454 = sand.u32 %s195, 1
        %s1455 = scalar_lea.sflag [#allocation5], %s1454
        %s1456 = sand.u32 %s195, 1
        %s1457 = scalar_lea.vmem [#allocation4], %s1456
        // Predicated region
        $region98: #{simple_cnn_forward.1} parent=84 // pred_check
          %p1458 = pneg %p205
        $region99: #{simple_cnn_forward.1} parent=84 // pred_check_branch
          %1460 = sbr.rel (%p1458) target = $region101
        $region100: #{simple_cnn_forward.1} parent=84 // pred_region
          %s1462 = ssub.s32 16, 16
          %1463 = vsyncadd %s1455, %s1462
          %s1464 = smul.addr %s25, 16
          %s1465 = scalar_lea.hbm %s7, %s1464
          %s1467 = sshll.u32 %s1457, 4
          %s1468 = int_to_ptr.vmem [resolvable:$true] %s1467
          %1470 = dma.vmem_to_hbm [thread:$0]  %s1468, 16, %s1465, %s1455
        $region101: #{simple_cnn_forward.1} parent=84 // pred_fallthru
          _
      $region85: #{simple_cnn_forward.1} parent=5 // pred_fallthru
        _
      %p1471 = scmp.le.s32.totalorder 2, %s16
      // Predicated region
      $region102: #{simple_cnn_forward.1} parent=5 // pred_check
        %p1472 = pneg %p1471
      $region103: #{simple_cnn_forward.1} parent=5 // pred_check_branch
        %1474 = sbr.rel (%p1472) target = $region105
      $region104: #{simple_cnn_forward.1} parent=5 // pred_region
        %s1475 = ssub.s32 %s16, 2
        // Predicated region
        $region106: #{simple_cnn_forward.1} parent=104 // pred_check
          %p1476 = pneg %p211
        $region107: #{simple_cnn_forward.1} parent=104 // pred_check_branch
          %1478 = sbr.rel (%p1476) target = $region109
        $region108: #{simple_cnn_forward.1} parent=104 // pred_region
          %s1479 = sand.u32 %s196, 1
          %s1480 = scalar_lea.sflag [#allocation5], %s1479
          %s1481 = sand.u32 %s196, 1
          %s1482 = scalar_lea.vmem [#allocation4], %s1481
          %1483 = dma.done %s1480, 16
        $region109: #{simple_cnn_forward.1} parent=104 // pred_fallthru
          _
      $region105: #{simple_cnn_forward.1} parent=5 // pred_fallthru
        _
    $region6: #{simple_cnn_forward.1} parent=1 // loop_footer
      %s20 = sadd.s32 1, %s16
    $region7: #{simple_cnn_forward.1} parent=1 // loop_footer_branch
      %15 = sbr.rel target = $region3
    $region8: #{simple_cnn_forward.1} parent=1 // loop_exit
      _
    %1484 = vsyncpa [#allocation5], 1
    %s1485 = scalar_lea.sflag [#allocation5], 1
    %1486 = vsyncpa %s1485, 1

</llo_original>
